<compile_context>
chip_gen: v7x
topology: tpu7x:2x2x1
jax: 0.10.0
libtpu: 0.0.40
codegen_flags: <defaults>
</compile_context>

<pallas_src>
import numpy as np
import jax
import jax.numpy as jnp
from jax.experimental import pallas as pl
from jax.experimental.pallas import tpu as pltpu

# ----------------------------- hyper-params ---------------------------------
B       = 2      # batch
T       = 16     # time steps (divisible by KS)
C_IN    = 16     # in_channels
H       = 32     # rnn_dim
KS      = 4      # conv kernel size == stride
NLAYERS = 2
N_TARG  = 30
TP      = T // KS   # conv output length == GRU sequence length


# ----------------------------- fused Pallas kernel ---------------------------
def fused_kernel(x_ref, mask_ref,
                 wih0_ref, whh0_ref, bih0_ref, bhh0_ref,
                 wih1_ref, whh1_ref, bih1_ref, bhh1_ref,
                 dw_ref, db_ref, out_ref):
    f32 = jnp.float32
    H2 = 2 * H

    fwd_m = mask_ref[...]          # (1, 6H): 1.0 on forward-direction columns
    bwd_m = 1.0 - fwd_m
    half_f = fwd_m[:, :H2]         # (1, 2H): 1.0 on the forward half of h
    half_b = 1.0 - half_f

    def bigru_layer(seq_flat, wih, whh, bih, bhh, need_seq):
        """One bidirectional GRU layer with both directions fused.

        seq_flat: (Tp*B, Din) input sequence, row index = t*B + b.
        Gate-major merged layout: columns [r_f r_b z_f z_b n_f n_b], each H.
        whh is block-diagonal (2H, 6H) so h = [h_f | h_b] drives both dirs.
        Returns (h_n, output_sequence or None).
        """
        # Hoisted input projection: one lane-dense matmul for all steps/dirs.
        gx_all = jnp.dot(seq_flat, wih,
                         preferred_element_type=f32) + bih          # (Tp*B, 6H)
        h = jnp.zeros((B, H2), f32)
        hs = []
        for t in range(TP):                      # fully unrolled (TP static)
            gx_f = gx_all[t * B:(t + 1) * B, :]              # fwd input @ t
            gx_b = gx_all[(TP - 1 - t) * B:(TP - t) * B, :]  # bwd input @ TP-1-t
            gx = fwd_m * gx_f + bwd_m * gx_b                          # (B, 6H)
            gh = jnp.dot(h, whh, preferred_element_type=f32) + bhh    # (B, 6H)
            s = gx + gh
            r = jax.nn.sigmoid(s[:, 0:H2])
            z = jax.nn.sigmoid(s[:, H2:2 * H2])
            n = jnp.tanh(gx[:, 2 * H2:3 * H2] + r * gh[:, 2 * H2:3 * H2])
            h = (1.0 - z) * n + z * h                                 # (B, 2H)
            if need_seq:
                hs.append(h)
        if not need_seq:
            return h, None
        # Assemble the layer output sequence entirely in vregs:
        # time-t row block = [h_f(t) | h_b(t)]; h_b(t) was produced at step
        # index TP-1-t, so select per half with a lane mask (no slicing/flip).
        rows = [half_f * hs[t] + half_b * hs[TP - 1 - t] for t in range(TP)]
        return h, jnp.concatenate(rows, axis=0)                # (Tp*B, 2H)

    # Layer 0 (Conv1d already folded into wih0/bih0 on the host).
    _, seq1 = bigru_layer(x_ref[...], wih0_ref[...], whh0_ref[...],
                          bih0_ref[...], bhh0_ref[...], need_seq=True)
    # Layer 1: only h_n is consumed downstream -> no output-sequence build.
    feat, _ = bigru_layer(seq1, wih1_ref[...], whh1_ref[...],
                          bih1_ref[...], bhh1_ref[...], need_seq=False)

    # Dense head.
    out_ref[...] = jnp.dot(feat, dw_ref[...],
                           preferred_element_type=f32) + db_ref[...]


def _vmem_spec():
    return pl.BlockSpec(memory_space=pltpu.MemorySpace.VMEM)


@jax.jit
def cnn_rnn_forward(x, fused):
    """x: (B, T, C_IN) float32  ->  (B, N_TARG) float32."""
    Bn, Tn, Cn = x.shape
    Tp = Tn // KS
    # Non-overlapping patches, rows ordered (t, b), columns (k, c)-flattened.
    patches = jnp.transpose(x.reshape(Bn, Tp, KS * Cn), (1, 0, 2))
    patches = patches.reshape(Tp * Bn, KS * Cn)

    return pl.pallas_call(
        fused_kernel,
        out_shape=jax.ShapeDtypeStruct((Bn, N_TARG), jnp.float32),
        in_specs=[_vmem_spec()] * 12,
        out_specs=_vmem_spec(),
    )(patches, fused["dir_mask"],
      fused["wih0"], fused["whh0"], fused["bih0"], fused["bhh0"],
      fused["wih1"], fused["whh1"], fused["bih1"], fused["bhh1"],
      fused["dense_w"], fused["dense_b"])


# ----------------------------- param prep ------------------------------------
def prepare_fused_params(params):
    """Merge per-direction GRU weights into gate-major fused layouts.

    For each layer:
      wih: (Din, 6H), columns [r_f r_b z_f z_b n_f n_b]
      whh: (2H, 6H), block-diagonal so [h_f | h_b] @ whh hits both directions
      bih / bhh: (1, 6H) in the same gate-major order
    The Conv1d (stride == kernel) is folded into layer-0's wih/bih.
    """
    def merge_cols(wf, wb):
        blocks = []
        for g in range(3):
            blocks.append(wf[:, g * H:(g + 1) * H])
            blocks.append(wb[:, g * H:(g + 1) * H])
        return jnp.concatenate(blocks, axis=1)

    def merge_whh(whf, whb):
        z = jnp.zeros((H, H), jnp.float32)
        top, bot = [], []
        for g in range(3):
            top += [whf[:, g * H:(g + 1) * H], z]
            bot += [z, whb[:, g * H:(g + 1) * H]]
        return jnp.concatenate([jnp.concatenate(top, axis=1),
                                jnp.concatenate(bot, axis=1)], axis=0)

    fused = {"dense_w": params["dense_w"], "dense_b": params["dense_b"]}
    for layer in range(NLAYERS):
        wih_f, whh_f, bih_f, bhh_f = params["gru"][layer]["f"]
        wih_b, whh_b, bih_b, bhh_b = params["gru"][layer]["b"]
        wih = merge_cols(wih_f, wih_b)                        # (Din, 6H)
        bih = merge_cols(bih_f, bih_b)                        # (1, 6H)
        if layer == 0:
            # Fold Conv1d into the layer-0 input projection (eval-mode
            # dropout is identity, so the fold is exact up to fp rounding):
            #   (patches @ cw + cb) @ wih + bih
            #     = patches @ (cw @ wih) + (cb @ wih + bih)
            bih_new = params["conv_b"] @ wih + bih            # (1, 6H)
            wih_new = params["conv_w"] @ wih                  # (K*C, 6H)
            wih, bih = wih_new, bih_new
        fused[f"wih{layer}"] = wih
        fused[f"bih{layer}"] = bih
        fused[f"whh{layer}"] = merge_whh(whh_f, whh_b)
        fused[f"bhh{layer}"] = merge_cols(bhh_f, bhh_b)

    mask = np.zeros((1, 6 * H), np.float32)
    for g in range(3):
        mask[0, 2 * g * H:(2 * g + 1) * H] = 1.0
    fused["dir_mask"] = jnp.asarray(mask)
    return fused


# ----------------------------- pure-JAX reference ----------------------------
def _ref_gru_dir(x_seq, wih, whh, bih, bhh, reverse):
    if reverse:
        x_seq = jnp.flip(x_seq, axis=0)
    Bn = x_seq.shape[1]
    Hn = whh.shape[0]

    def step(h, x_t):
        gx = x_t @ wih + bih
        gh = h @ whh + bhh
        r = jax.nn.sigmoid(gx[:, :Hn] + gh[:, :Hn])
        z = jax.nn.sigmoid(gx[:, Hn:2 * Hn] + gh[:, Hn:2 * Hn])
        n = jnp.tanh(gx[:, 2 * Hn:] + r * gh[:, 2 * Hn:])
        h_new = (1.0 - z) * n + z * h
        return h_new, h_new

    h_last, outs = jax.lax.scan(step, jnp.zeros((Bn, Hn), jnp.float32), x_seq)
    if reverse:
        outs = jnp.flip(outs, axis=0)
    return outs, h_last


def ref_forward(x, params):
    Bn, Tn, Cn = x.shape
    Tp = Tn // KS
    patches = x.reshape(Bn * Tp, KS * Cn)
    conv = (patches @ params["conv_w"] + params["conv_b"]).reshape(Bn, Tp, H)
    seq = jnp.transpose(conv, (1, 0, 2))
    out_f0, _ = _ref_gru_dir(seq, *params["gru"][0]["f"], reverse=False)
    out_b0, _ = _ref_gru_dir(seq, *params["gru"][0]["b"], reverse=True)
    seq1 = jnp.concatenate([out_f0, out_b0], axis=-1)
    _, h_f1 = _ref_gru_dir(seq1, *params["gru"][1]["f"], reverse=False)
    _, h_b1 = _ref_gru_dir(seq1, *params["gru"][1]["b"], reverse=True)
    feat = jnp.concatenate([h_f1, h_b1], axis=-1)
    return feat @ params["dense_w"] + params["dense_b"]


# ----------------------------- param init ------------------------------------
def init_params(key):
    def uni(key, shape, fan_in):
        bound = 1.0 / jnp.sqrt(jnp.float32(fan_in))
        return jax.random.uniform(key, shape, jnp.float32, -bound, bound)

    keys = iter(jax.random.split(key, 64))
    params = {}
    # Conv1d weight (O, C, K) stored transposed/flattened as (K*C, O)
    params["conv_w"] = uni(next(keys), (KS * C_IN, H), C_IN * KS)
    params["conv_b"] = uni(next(keys), (1, H), C_IN * KS)

    gru = []
    for layer in range(NLAYERS):
        din = H if layer == 0 else 2 * H
        layer_p = {}
        for d in ("f", "b"):
            wih = uni(next(keys), (din, 3 * H), H)
            whh = uni(next(keys), (H, 3 * H), H)
            bih = uni(next(keys), (1, 3 * H), H)
            bhh = uni(next(keys), (1, 3 * H), H)
            layer_p[d] = (wih, whh, bih, bhh)
        gru.append(layer_p)
    params["gru"] = gru

    params["dense_w"] = uni(next(keys), (2 * H, N_TARG), 2 * H)
    params["dense_b"] = uni(next(keys), (1, N_TARG), 2 * H)
    return params


# ----------------------------- main -------------------------------------------
if __name__ == "__main__":
    key = jax.random.PRNGKey(0)
    k_x, k_p = jax.random.split(key)
    x = jax.random.normal(k_x, (B, T, C_IN), jnp.float32)
    params = init_params(k_p)
    fused = prepare_fused_params(params)

    out = jax.block_until_ready(cnn_rnn_forward(x, fused))
    ref = jax.block_until_ready(ref_forward(x, params))

    assert out.shape == (B, N_TARG), out.shape
    assert jnp.all(jnp.isfinite(out))
    assert jnp.allclose(out, ref, rtol=2e-3, atol=2e-3), (
        float(jnp.max(jnp.abs(out - ref))))
    print("KERNEL_OK")
</pallas_src>

<mosaic_0001>
module attributes {stable_mosaic.version = 11 : i64} {
  func.func @fused_kernel(%arg0: memref<8x64xf32, #tpu.memory_space<vmem>>, %arg1: memref<1x192xf32, #tpu.memory_space<vmem>>, %arg2: memref<64x192xf32, #tpu.memory_space<vmem>>, %arg3: memref<64x192xf32, #tpu.memory_space<vmem>>, %arg4: memref<1x192xf32, #tpu.memory_space<vmem>>, %arg5: memref<1x192xf32, #tpu.memory_space<vmem>>, %arg6: memref<64x192xf32, #tpu.memory_space<vmem>>, %arg7: memref<64x192xf32, #tpu.memory_space<vmem>>, %arg8: memref<1x192xf32, #tpu.memory_space<vmem>>, %arg9: memref<1x192xf32, #tpu.memory_space<vmem>>, %arg10: memref<64x30xf32, #tpu.memory_space<vmem>>, %arg11: memref<1x30xf32, #tpu.memory_space<vmem>>, %arg12: memref<2x30xf32, #tpu.memory_space<vmem>>) attributes {dimension_semantics = [], scalar_prefetch = 0 : i64, scratch_operands = 0 : i64, tpu.core_type = #tpu.core_type<tc>} {
    %c0 = arith.constant 0 : index
    %c0_0 = arith.constant 0 : index
    %0 = vector.load %arg1[%c0, %c0_0] : memref<1x192xf32, #tpu.memory_space<vmem>>, vector<1x192xf32>
    %cst = arith.constant 1.000000e+00 : f32
    %1 = vector.broadcast %cst : f32 to vector<1x192xf32>
    %2 = arith.subf %1, %0 : vector<1x192xf32>
    %3 = vector.extract_strided_slice %0 {offsets = [0, 0], sizes = [1, 64], strides = [1, 1]} : vector<1x192xf32> to vector<1x64xf32>
    %cst_1 = arith.constant 1.000000e+00 : f32
    %4 = vector.broadcast %cst_1 : f32 to vector<1x64xf32>
    %5 = arith.subf %4, %3 : vector<1x64xf32>
    %c0_2 = arith.constant 0 : index
    %c0_3 = arith.constant 0 : index
    %6 = vector.load %arg0[%c0_2, %c0_3] : memref<8x64xf32, #tpu.memory_space<vmem>>, vector<8x64xf32>
    %c0_4 = arith.constant 0 : index
    %c0_5 = arith.constant 0 : index
    %7 = vector.load %arg2[%c0_4, %c0_5] : memref<64x192xf32, #tpu.memory_space<vmem>>, vector<64x192xf32>
    %c0_6 = arith.constant 0 : index
    %c0_7 = arith.constant 0 : index
    %8 = vector.load %arg3[%c0_6, %c0_7] : memref<64x192xf32, #tpu.memory_space<vmem>>, vector<64x192xf32>
    %c0_8 = arith.constant 0 : index
    %c0_9 = arith.constant 0 : index
    %9 = vector.load %arg4[%c0_8, %c0_9] : memref<1x192xf32, #tpu.memory_space<vmem>>, vector<1x192xf32>
    %c0_10 = arith.constant 0 : index
    %c0_11 = arith.constant 0 : index
    %10 = vector.load %arg5[%c0_10, %c0_11] : memref<1x192xf32, #tpu.memory_space<vmem>>, vector<1x192xf32>
    %cst_12 = arith.constant dense<0.000000e+00> : vector<8x192xf32>
    %11 = tpu.matmul %6, %7, %cst_12 {dimension_numbers = #tpu.dot_dimension_numbers<[1], [0], [0], [1], [0, 0, 1, 1], [], []>} : vector<8x64xf32>, vector<64x192xf32>, vector<8x192xf32> -> vector<8x192xf32>
    %12 = vector.broadcast %9 : vector<1x192xf32> to vector<8x192xf32>
    %13 = arith.addf %11, %12 : vector<8x192xf32>
    %cst_13 = arith.constant 0.000000e+00 : f32
    %14 = vector.broadcast %cst_13 : f32 to vector<2x64xf32>
    %15 = vector.extract_strided_slice %13 {offsets = [0, 0], sizes = [2, 192], strides = [1, 1]} : vector<8x192xf32> to vector<2x192xf32>
    %16 = vector.extract_strided_slice %13 {offsets = [6, 0], sizes = [2, 192], strides = [1, 1]} : vector<8x192xf32> to vector<2x192xf32>
    %17 = vector.broadcast %0 : vector<1x192xf32> to vector<2x192xf32>
    %18 = arith.mulf %17, %15 : vector<2x192xf32>
    %19 = vector.broadcast %2 : vector<1x192xf32> to vector<2x192xf32>
    %20 = arith.mulf %19, %16 : vector<2x192xf32>
    %21 = arith.addf %18, %20 : vector<2x192xf32>
    %cst_14 = arith.constant dense<0.000000e+00> : vector<2x192xf32>
    %22 = tpu.matmul %14, %8, %cst_14 {dimension_numbers = #tpu.dot_dimension_numbers<[1], [0], [0], [1], [0, 0, 1, 1], [], []>} : vector<2x64xf32>, vector<64x192xf32>, vector<2x192xf32> -> vector<2x192xf32>
    %23 = vector.broadcast %10 : vector<1x192xf32> to vector<2x192xf32>
    %24 = arith.addf %22, %23 : vector<2x192xf32>
    %25 = arith.addf %21, %24 : vector<2x192xf32>
    %26 = vector.extract_strided_slice %25 {offsets = [0, 0], sizes = [2, 64], strides = [1, 1]} : vector<2x192xf32> to vector<2x64xf32>
    %27 = arith.negf %26 : vector<2x64xf32>
    %28 = math.exp %27 : vector<2x64xf32>
    %cst_15 = arith.constant 1.000000e+00 : f32
    %29 = vector.broadcast %cst_15 : f32 to vector<2x64xf32>
    %30 = arith.addf %29, %28 : vector<2x64xf32>
    %31 = arith.divf %29, %30 : vector<2x64xf32>
    %32 = vector.extract_strided_slice %25 {offsets = [0, 64], sizes = [2, 64], strides = [1, 1]} : vector<2x192xf32> to vector<2x64xf32>
    %33 = arith.negf %32 : vector<2x64xf32>
    %34 = math.exp %33 : vector<2x64xf32>
    %cst_16 = arith.constant 1.000000e+00 : f32
    %35 = vector.broadcast %cst_16 : f32 to vector<2x64xf32>
    %36 = arith.addf %35, %34 : vector<2x64xf32>
    %37 = arith.divf %35, %36 : vector<2x64xf32>
    %38 = vector.extract_strided_slice %21 {offsets = [0, 128], sizes = [2, 64], strides = [1, 1]} : vector<2x192xf32> to vector<2x64xf32>
    %39 = vector.extract_strided_slice %24 {offsets = [0, 128], sizes = [2, 64], strides = [1, 1]} : vector<2x192xf32> to vector<2x64xf32>
    %40 = arith.mulf %31, %39 : vector<2x64xf32>
    %41 = arith.addf %38, %40 : vector<2x64xf32>
    %42 = math.tanh %41 : vector<2x64xf32>
    %cst_17 = arith.constant 1.000000e+00 : f32
    %43 = vector.broadcast %cst_17 : f32 to vector<2x64xf32>
    %44 = arith.subf %43, %37 : vector<2x64xf32>
    %45 = arith.mulf %44, %42 : vector<2x64xf32>
    %46 = arith.mulf %37, %14 : vector<2x64xf32>
    %47 = arith.addf %45, %46 : vector<2x64xf32>
    %48 = vector.extract_strided_slice %13 {offsets = [2, 0], sizes = [2, 192], strides = [1, 1]} : vector<8x192xf32> to vector<2x192xf32>
    %49 = vector.extract_strided_slice %13 {offsets = [4, 0], sizes = [2, 192], strides = [1, 1]} : vector<8x192xf32> to vector<2x192xf32>
    %50 = vector.broadcast %0 : vector<1x192xf32> to vector<2x192xf32>
    %51 = arith.mulf %50, %48 : vector<2x192xf32>
    %52 = vector.broadcast %2 : vector<1x192xf32> to vector<2x192xf32>
    %53 = arith.mulf %52, %49 : vector<2x192xf32>
    %54 = arith.addf %51, %53 : vector<2x192xf32>
    %cst_18 = arith.constant dense<0.000000e+00> : vector<2x192xf32>
    %55 = tpu.matmul %47, %8, %cst_18 {dimension_numbers = #tpu.dot_dimension_numbers<[1], [0], [0], [1], [0, 0, 1, 1], [], []>} : vector<2x64xf32>, vector<64x192xf32>, vector<2x192xf32> -> vector<2x192xf32>
    %56 = vector.broadcast %10 : vector<1x192xf32> to vector<2x192xf32>
    %57 = arith.addf %55, %56 : vector<2x192xf32>
    %58 = arith.addf %54, %57 : vector<2x192xf32>
    %59 = vector.extract_strided_slice %58 {offsets = [0, 0], sizes = [2, 64], strides = [1, 1]} : vector<2x192xf32> to vector<2x64xf32>
    %60 = arith.negf %59 : vector<2x64xf32>
    %61 = math.exp %60 : vector<2x64xf32>
    %cst_19 = arith.constant 1.000000e+00 : f32
    %62 = vector.broadcast %cst_19 : f32 to vector<2x64xf32>
    %63 = arith.addf %62, %61 : vector<2x64xf32>
    %64 = arith.divf %62, %63 : vector<2x64xf32>
    %65 = vector.extract_strided_slice %58 {offsets = [0, 64], sizes = [2, 64], strides = [1, 1]} : vector<2x192xf32> to vector<2x64xf32>
    %66 = arith.negf %65 : vector<2x64xf32>
    %67 = math.exp %66 : vector<2x64xf32>
    %cst_20 = arith.constant 1.000000e+00 : f32
    %68 = vector.broadcast %cst_20 : f32 to vector<2x64xf32>
    %69 = arith.addf %68, %67 : vector<2x64xf32>
    %70 = arith.divf %68, %69 : vector<2x64xf32>
    %71 = vector.extract_strided_slice %54 {offsets = [0, 128], sizes = [2, 64], strides = [1, 1]} : vector<2x192xf32> to vector<2x64xf32>
    %72 = vector.extract_strided_slice %57 {offsets = [0, 128], sizes = [2, 64], strides = [1, 1]} : vector<2x192xf32> to vector<2x64xf32>
    %73 = arith.mulf %64, %72 : vector<2x64xf32>
    %74 = arith.addf %71, %73 : vector<2x64xf32>
    %75 = math.tanh %74 : vector<2x64xf32>
    %cst_21 = arith.constant 1.000000e+00 : f32
    %76 = vector.broadcast %cst_21 : f32 to vector<2x64xf32>
    %77 = arith.subf %76, %70 : vector<2x64xf32>
    %78 = arith.mulf %77, %75 : vector<2x64xf32>
    %79 = arith.mulf %70, %47 : vector<2x64xf32>
    %80 = arith.addf %78, %79 : vector<2x64xf32>
    %81 = vector.extract_strided_slice %13 {offsets = [4, 0], sizes = [2, 192], strides = [1, 1]} : vector<8x192xf32> to vector<2x192xf32>
    %82 = vector.extract_strided_slice %13 {offsets = [2, 0], sizes = [2, 192], strides = [1, 1]} : vector<8x192xf32> to vector<2x192xf32>
    %83 = vector.broadcast %0 : vector<1x192xf32> to vector<2x192xf32>
    %84 = arith.mulf %83, %81 : vector<2x192xf32>
    %85 = vector.broadcast %2 : vector<1x192xf32> to vector<2x192xf32>
    %86 = arith.mulf %85, %82 : vector<2x192xf32>
    %87 = arith.addf %84, %86 : vector<2x192xf32>
    %cst_22 = arith.constant dense<0.000000e+00> : vector<2x192xf32>
    %88 = tpu.matmul %80, %8, %cst_22 {dimension_numbers = #tpu.dot_dimension_numbers<[1], [0], [0], [1], [0, 0, 1, 1], [], []>} : vector<2x64xf32>, vector<64x192xf32>, vector<2x192xf32> -> vector<2x192xf32>
    %89 = vector.broadcast %10 : vector<1x192xf32> to vector<2x192xf32>
    %90 = arith.addf %88, %89 : vector<2x192xf32>
    %91 = arith.addf %87, %90 : vector<2x192xf32>
    %92 = vector.extract_strided_slice %91 {offsets = [0, 0], sizes = [2, 64], strides = [1, 1]} : vector<2x192xf32> to vector<2x64xf32>
    %93 = arith.negf %92 : vector<2x64xf32>
    %94 = math.exp %93 : vector<2x64xf32>
    %cst_23 = arith.constant 1.000000e+00 : f32
    %95 = vector.broadcast %cst_23 : f32 to vector<2x64xf32>
    %96 = arith.addf %95, %94 : vector<2x64xf32>
    %97 = arith.divf %95, %96 : vector<2x64xf32>
    %98 = vector.extract_strided_slice %91 {offsets = [0, 64], sizes = [2, 64], strides = [1, 1]} : vector<2x192xf32> to vector<2x64xf32>
    %99 = arith.negf %98 : vector<2x64xf32>
    %100 = math.exp %99 : vector<2x64xf32>
    %cst_24 = arith.constant 1.000000e+00 : f32
    %101 = vector.broadcast %cst_24 : f32 to vector<2x64xf32>
    %102 = arith.addf %101, %100 : vector<2x64xf32>
    %103 = arith.divf %101, %102 : vector<2x64xf32>
    %104 = vector.extract_strided_slice %87 {offsets = [0, 128], sizes = [2, 64], strides = [1, 1]} : vector<2x192xf32> to vector<2x64xf32>
    %105 = vector.extract_strided_slice %90 {offsets = [0, 128], sizes = [2, 64], strides = [1, 1]} : vector<2x192xf32> to vector<2x64xf32>
    %106 = arith.mulf %97, %105 : vector<2x64xf32>
    %107 = arith.addf %104, %106 : vector<2x64xf32>
    %108 = math.tanh %107 : vector<2x64xf32>
    %cst_25 = arith.constant 1.000000e+00 : f32
    %109 = vector.broadcast %cst_25 : f32 to vector<2x64xf32>
    %110 = arith.subf %109, %103 : vector<2x64xf32>
    %111 = arith.mulf %110, %108 : vector<2x64xf32>
    %112 = arith.mulf %103, %80 : vector<2x64xf32>
    %113 = arith.addf %111, %112 : vector<2x64xf32>
    %114 = vector.extract_strided_slice %13 {offsets = [6, 0], sizes = [2, 192], strides = [1, 1]} : vector<8x192xf32> to vector<2x192xf32>
    %115 = vector.extract_strided_slice %13 {offsets = [0, 0], sizes = [2, 192], strides = [1, 1]} : vector<8x192xf32> to vector<2x192xf32>
    %116 = vector.broadcast %0 : vector<1x192xf32> to vector<2x192xf32>
    %117 = arith.mulf %116, %114 : vector<2x192xf32>
    %118 = vector.broadcast %2 : vector<1x192xf32> to vector<2x192xf32>
    %119 = arith.mulf %118, %115 : vector<2x192xf32>
    %120 = arith.addf %117, %119 : vector<2x192xf32>
    %cst_26 = arith.constant dense<0.000000e+00> : vector<2x192xf32>
    %121 = tpu.matmul %113, %8, %cst_26 {dimension_numbers = #tpu.dot_dimension_numbers<[1], [0], [0], [1], [0, 0, 1, 1], [], []>} : vector<2x64xf32>, vector<64x192xf32>, vector<2x192xf32> -> vector<2x192xf32>
    %122 = vector.broadcast %10 : vector<1x192xf32> to vector<2x192xf32>
    %123 = arith.addf %121, %122 : vector<2x192xf32>
    %124 = arith.addf %120, %123 : vector<2x192xf32>
    %125 = vector.extract_strided_slice %124 {offsets = [0, 0], sizes = [2, 64], strides = [1, 1]} : vector<2x192xf32> to vector<2x64xf32>
    %126 = arith.negf %125 : vector<2x64xf32>
    %127 = math.exp %126 : vector<2x64xf32>
    %cst_27 = arith.constant 1.000000e+00 : f32
    %128 = vector.broadcast %cst_27 : f32 to vector<2x64xf32>
    %129 = arith.addf %128, %127 : vector<2x64xf32>
    %130 = arith.divf %128, %129 : vector<2x64xf32>
    %131 = vector.extract_strided_slice %124 {offsets = [0, 64], sizes = [2, 64], strides = [1, 1]} : vector<2x192xf32> to vector<2x64xf32>
    %132 = arith.negf %131 : vector<2x64xf32>
    %133 = math.exp %132 : vector<2x64xf32>
    %cst_28 = arith.constant 1.000000e+00 : f32
    %134 = vector.broadcast %cst_28 : f32 to vector<2x64xf32>
    %135 = arith.addf %134, %133 : vector<2x64xf32>
    %136 = arith.divf %134, %135 : vector<2x64xf32>
    %137 = vector.extract_strided_slice %120 {offsets = [0, 128], sizes = [2, 64], strides = [1, 1]} : vector<2x192xf32> to vector<2x64xf32>
    %138 = vector.extract_strided_slice %123 {offsets = [0, 128], sizes = [2, 64], strides = [1, 1]} : vector<2x192xf32> to vector<2x64xf32>
    %139 = arith.mulf %130, %138 : vector<2x64xf32>
    %140 = arith.addf %137, %139 : vector<2x64xf32>
    %141 = math.tanh %140 : vector<2x64xf32>
    %cst_29 = arith.constant 1.000000e+00 : f32
    %142 = vector.broadcast %cst_29 : f32 to vector<2x64xf32>
    %143 = arith.subf %142, %136 : vector<2x64xf32>
    %144 = arith.mulf %143, %141 : vector<2x64xf32>
    %145 = arith.mulf %136, %113 : vector<2x64xf32>
    %146 = arith.addf %144, %145 : vector<2x64xf32>
    %147 = vector.broadcast %3 : vector<1x64xf32> to vector<2x64xf32>
    %148 = arith.mulf %147, %47 : vector<2x64xf32>
    %149 = vector.broadcast %5 : vector<1x64xf32> to vector<2x64xf32>
    %150 = arith.mulf %149, %146 : vector<2x64xf32>
    %151 = arith.addf %148, %150 : vector<2x64xf32>
    %152 = vector.broadcast %3 : vector<1x64xf32> to vector<2x64xf32>
    %153 = arith.mulf %152, %80 : vector<2x64xf32>
    %154 = vector.broadcast %5 : vector<1x64xf32> to vector<2x64xf32>
    %155 = arith.mulf %154, %113 : vector<2x64xf32>
    %156 = arith.addf %153, %155 : vector<2x64xf32>
    %157 = vector.broadcast %3 : vector<1x64xf32> to vector<2x64xf32>
    %158 = arith.mulf %157, %113 : vector<2x64xf32>
    %159 = vector.broadcast %5 : vector<1x64xf32> to vector<2x64xf32>
    %160 = arith.mulf %159, %80 : vector<2x64xf32>
    %161 = arith.addf %158, %160 : vector<2x64xf32>
    %162 = vector.broadcast %3 : vector<1x64xf32> to vector<2x64xf32>
    %163 = arith.mulf %162, %146 : vector<2x64xf32>
    %164 = vector.broadcast %5 : vector<1x64xf32> to vector<2x64xf32>
    %165 = arith.mulf %164, %47 : vector<2x64xf32>
    %166 = arith.addf %163, %165 : vector<2x64xf32>
    %167 = tpu.concatenate %151, %156, %161, %166 in 0 : vector<2x64xf32>, vector<2x64xf32>, vector<2x64xf32>, vector<2x64xf32> -> vector<8x64xf32>
    %c0_30 = arith.constant 0 : index
    %c0_31 = arith.constant 0 : index
    %168 = vector.load %arg6[%c0_30, %c0_31] : memref<64x192xf32, #tpu.memory_space<vmem>>, vector<64x192xf32>
    %c0_32 = arith.constant 0 : index
    %c0_33 = arith.constant 0 : index
    %169 = vector.load %arg7[%c0_32, %c0_33] : memref<64x192xf32, #tpu.memory_space<vmem>>, vector<64x192xf32>
    %c0_34 = arith.constant 0 : index
    %c0_35 = arith.constant 0 : index
    %170 = vector.load %arg8[%c0_34, %c0_35] : memref<1x192xf32, #tpu.memory_space<vmem>>, vector<1x192xf32>
    %c0_36 = arith.constant 0 : index
    %c0_37 = arith.constant 0 : index
    %171 = vector.load %arg9[%c0_36, %c0_37] : memref<1x192xf32, #tpu.memory_space<vmem>>, vector<1x192xf32>
    %cst_38 = arith.constant dense<0.000000e+00> : vector<8x192xf32>
    %172 = tpu.matmul %167, %168, %cst_38 {dimension_numbers = #tpu.dot_dimension_numbers<[1], [0], [0], [1], [0, 0, 1, 1], [], []>} : vector<8x64xf32>, vector<64x192xf32>, vector<8x192xf32> -> vector<8x192xf32>
    %173 = vector.broadcast %170 : vector<1x192xf32> to vector<8x192xf32>
    %174 = arith.addf %172, %173 : vector<8x192xf32>
    %cst_39 = arith.constant 0.000000e+00 : f32
    %175 = vector.broadcast %cst_39 : f32 to vector<2x64xf32>
    %176 = vector.extract_strided_slice %174 {offsets = [0, 0], sizes = [2, 192], strides = [1, 1]} : vector<8x192xf32> to vector<2x192xf32>
    %177 = vector.extract_strided_slice %174 {offsets = [6, 0], sizes = [2, 192], strides = [1, 1]} : vector<8x192xf32> to vector<2x192xf32>
    %178 = vector.broadcast %0 : vector<1x192xf32> to vector<2x192xf32>
    %179 = arith.mulf %178, %176 : vector<2x192xf32>
    %180 = vector.broadcast %2 : vector<1x192xf32> to vector<2x192xf32>
    %181 = arith.mulf %180, %177 : vector<2x192xf32>
    %182 = arith.addf %179, %181 : vector<2x192xf32>
    %cst_40 = arith.constant dense<0.000000e+00> : vector<2x192xf32>
    %183 = tpu.matmul %175, %169, %cst_40 {dimension_numbers = #tpu.dot_dimension_numbers<[1], [0], [0], [1], [0, 0, 1, 1], [], []>} : vector<2x64xf32>, vector<64x192xf32>, vector<2x192xf32> -> vector<2x192xf32>
    %184 = vector.broadcast %171 : vector<1x192xf32> to vector<2x192xf32>
    %185 = arith.addf %183, %184 : vector<2x192xf32>
    %186 = arith.addf %182, %185 : vector<2x192xf32>
    %187 = vector.extract_strided_slice %186 {offsets = [0, 0], sizes = [2, 64], strides = [1, 1]} : vector<2x192xf32> to vector<2x64xf32>
    %188 = arith.negf %187 : vector<2x64xf32>
    %189 = math.exp %188 : vector<2x64xf32>
    %cst_41 = arith.constant 1.000000e+00 : f32
    %190 = vector.broadcast %cst_41 : f32 to vector<2x64xf32>
    %191 = arith.addf %190, %189 : vector<2x64xf32>
    %192 = arith.divf %190, %191 : vector<2x64xf32>
    %193 = vector.extract_strided_slice %186 {offsets = [0, 64], sizes = [2, 64], strides = [1, 1]} : vector<2x192xf32> to vector<2x64xf32>
    %194 = arith.negf %193 : vector<2x64xf32>
    %195 = math.exp %194 : vector<2x64xf32>
    %cst_42 = arith.constant 1.000000e+00 : f32
    %196 = vector.broadcast %cst_42 : f32 to vector<2x64xf32>
    %197 = arith.addf %196, %195 : vector<2x64xf32>
    %198 = arith.divf %196, %197 : vector<2x64xf32>
    %199 = vector.extract_strided_slice %182 {offsets = [0, 128], sizes = [2, 64], strides = [1, 1]} : vector<2x192xf32> to vector<2x64xf32>
    %200 = vector.extract_strided_slice %185 {offsets = [0, 128], sizes = [2, 64], strides = [1, 1]} : vector<2x192xf32> to vector<2x64xf32>
    %201 = arith.mulf %192, %200 : vector<2x64xf32>
    %202 = arith.addf %199, %201 : vector<2x64xf32>
    %203 = math.tanh %202 : vector<2x64xf32>
    %cst_43 = arith.constant 1.000000e+00 : f32
    %204 = vector.broadcast %cst_43 : f32 to vector<2x64xf32>
    %205 = arith.subf %204, %198 : vector<2x64xf32>
    %206 = arith.mulf %205, %203 : vector<2x64xf32>
    %207 = arith.mulf %198, %175 : vector<2x64xf32>
    %208 = arith.addf %206, %207 : vector<2x64xf32>
    %209 = vector.extract_strided_slice %174 {offsets = [2, 0], sizes = [2, 192], strides = [1, 1]} : vector<8x192xf32> to vector<2x192xf32>
    %210 = vector.extract_strided_slice %174 {offsets = [4, 0], sizes = [2, 192], strides = [1, 1]} : vector<8x192xf32> to vector<2x192xf32>
    %211 = vector.broadcast %0 : vector<1x192xf32> to vector<2x192xf32>
    %212 = arith.mulf %211, %209 : vector<2x192xf32>
    %213 = vector.broadcast %2 : vector<1x192xf32> to vector<2x192xf32>
    %214 = arith.mulf %213, %210 : vector<2x192xf32>
    %215 = arith.addf %212, %214 : vector<2x192xf32>
    %cst_44 = arith.constant dense<0.000000e+00> : vector<2x192xf32>
    %216 = tpu.matmul %208, %169, %cst_44 {dimension_numbers = #tpu.dot_dimension_numbers<[1], [0], [0], [1], [0, 0, 1, 1], [], []>} : vector<2x64xf32>, vector<64x192xf32>, vector<2x192xf32> -> vector<2x192xf32>
    %217 = vector.broadcast %171 : vector<1x192xf32> to vector<2x192xf32>
    %218 = arith.addf %216, %217 : vector<2x192xf32>
    %219 = arith.addf %215, %218 : vector<2x192xf32>
    %220 = vector.extract_strided_slice %219 {offsets = [0, 0], sizes = [2, 64], strides = [1, 1]} : vector<2x192xf32> to vector<2x64xf32>
    %221 = arith.negf %220 : vector<2x64xf32>
    %222 = math.exp %221 : vector<2x64xf32>
    %cst_45 = arith.constant 1.000000e+00 : f32
    %223 = vector.broadcast %cst_45 : f32 to vector<2x64xf32>
    %224 = arith.addf %223, %222 : vector<2x64xf32>
    %225 = arith.divf %223, %224 : vector<2x64xf32>
    %226 = vector.extract_strided_slice %219 {offsets = [0, 64], sizes = [2, 64], strides = [1, 1]} : vector<2x192xf32> to vector<2x64xf32>
    %227 = arith.negf %226 : vector<2x64xf32>
    %228 = math.exp %227 : vector<2x64xf32>
    %cst_46 = arith.constant 1.000000e+00 : f32
    %229 = vector.broadcast %cst_46 : f32 to vector<2x64xf32>
    %230 = arith.addf %229, %228 : vector<2x64xf32>
    %231 = arith.divf %229, %230 : vector<2x64xf32>
    %232 = vector.extract_strided_slice %215 {offsets = [0, 128], sizes = [2, 64], strides = [1, 1]} : vector<2x192xf32> to vector<2x64xf32>
    %233 = vector.extract_strided_slice %218 {offsets = [0, 128], sizes = [2, 64], strides = [1, 1]} : vector<2x192xf32> to vector<2x64xf32>
    %234 = arith.mulf %225, %233 : vector<2x64xf32>
    %235 = arith.addf %232, %234 : vector<2x64xf32>
    %236 = math.tanh %235 : vector<2x64xf32>
    %cst_47 = arith.constant 1.000000e+00 : f32
    %237 = vector.broadcast %cst_47 : f32 to vector<2x64xf32>
    %238 = arith.subf %237, %231 : vector<2x64xf32>
    %239 = arith.mulf %238, %236 : vector<2x64xf32>
    %240 = arith.mulf %231, %208 : vector<2x64xf32>
    %241 = arith.addf %239, %240 : vector<2x64xf32>
    %242 = vector.extract_strided_slice %174 {offsets = [4, 0], sizes = [2, 192], strides = [1, 1]} : vector<8x192xf32> to vector<2x192xf32>
    %243 = vector.extract_strided_slice %174 {offsets = [2, 0], sizes = [2, 192], strides = [1, 1]} : vector<8x192xf32> to vector<2x192xf32>
    %244 = vector.broadcast %0 : vector<1x192xf32> to vector<2x192xf32>
    %245 = arith.mulf %244, %242 : vector<2x192xf32>
    %246 = vector.broadcast %2 : vector<1x192xf32> to vector<2x192xf32>
    %247 = arith.mulf %246, %243 : vector<2x192xf32>
    %248 = arith.addf %245, %247 : vector<2x192xf32>
    %cst_48 = arith.constant dense<0.000000e+00> : vector<2x192xf32>
    %249 = tpu.matmul %241, %169, %cst_48 {dimension_numbers = #tpu.dot_dimension_numbers<[1], [0], [0], [1], [0, 0, 1, 1], [], []>} : vector<2x64xf32>, vector<64x192xf32>, vector<2x192xf32> -> vector<2x192xf32>
    %250 = vector.broadcast %171 : vector<1x192xf32> to vector<2x192xf32>
    %251 = arith.addf %249, %250 : vector<2x192xf32>
    %252 = arith.addf %248, %251 : vector<2x192xf32>
    %253 = vector.extract_strided_slice %252 {offsets = [0, 0], sizes = [2, 64], strides = [1, 1]} : vector<2x192xf32> to vector<2x64xf32>
    %254 = arith.negf %253 : vector<2x64xf32>
    %255 = math.exp %254 : vector<2x64xf32>
    %cst_49 = arith.constant 1.000000e+00 : f32
    %256 = vector.broadcast %cst_49 : f32 to vector<2x64xf32>
    %257 = arith.addf %256, %255 : vector<2x64xf32>
    %258 = arith.divf %256, %257 : vector<2x64xf32>
    %259 = vector.extract_strided_slice %252 {offsets = [0, 64], sizes = [2, 64], strides = [1, 1]} : vector<2x192xf32> to vector<2x64xf32>
    %260 = arith.negf %259 : vector<2x64xf32>
    %261 = math.exp %260 : vector<2x64xf32>
    %cst_50 = arith.constant 1.000000e+00 : f32
    %262 = vector.broadcast %cst_50 : f32 to vector<2x64xf32>
    %263 = arith.addf %262, %261 : vector<2x64xf32>
    %264 = arith.divf %262, %263 : vector<2x64xf32>
    %265 = vector.extract_strided_slice %248 {offsets = [0, 128], sizes = [2, 64], strides = [1, 1]} : vector<2x192xf32> to vector<2x64xf32>
    %266 = vector.extract_strided_slice %251 {offsets = [0, 128], sizes = [2, 64], strides = [1, 1]} : vector<2x192xf32> to vector<2x64xf32>
    %267 = arith.mulf %258, %266 : vector<2x64xf32>
    %268 = arith.addf %265, %267 : vector<2x64xf32>
    %269 = math.tanh %268 : vector<2x64xf32>
    %cst_51 = arith.constant 1.000000e+00 : f32
    %270 = vector.broadcast %cst_51 : f32 to vector<2x64xf32>
    %271 = arith.subf %270, %264 : vector<2x64xf32>
    %272 = arith.mulf %271, %269 : vector<2x64xf32>
    %273 = arith.mulf %264, %241 : vector<2x64xf32>
    %274 = arith.addf %272, %273 : vector<2x64xf32>
    %275 = vector.extract_strided_slice %174 {offsets = [6, 0], sizes = [2, 192], strides = [1, 1]} : vector<8x192xf32> to vector<2x192xf32>
    %276 = vector.extract_strided_slice %174 {offsets = [0, 0], sizes = [2, 192], strides = [1, 1]} : vector<8x192xf32> to vector<2x192xf32>
    %277 = vector.broadcast %0 : vector<1x192xf32> to vector<2x192xf32>
    %278 = arith.mulf %277, %275 : vector<2x192xf32>
    %279 = vector.broadcast %2 : vector<1x192xf32> to vector<2x192xf32>
    %280 = arith.mulf %279, %276 : vector<2x192xf32>
    %281 = arith.addf %278, %280 : vector<2x192xf32>
    %cst_52 = arith.constant dense<0.000000e+00> : vector<2x192xf32>
    %282 = tpu.matmul %274, %169, %cst_52 {dimension_numbers = #tpu.dot_dimension_numbers<[1], [0], [0], [1], [0, 0, 1, 1], [], []>} : vector<2x64xf32>, vector<64x192xf32>, vector<2x192xf32> -> vector<2x192xf32>
    %283 = vector.broadcast %171 : vector<1x192xf32> to vector<2x192xf32>
    %284 = arith.addf %282, %283 : vector<2x192xf32>
    %285 = arith.addf %281, %284 : vector<2x192xf32>
    %286 = vector.extract_strided_slice %285 {offsets = [0, 0], sizes = [2, 64], strides = [1, 1]} : vector<2x192xf32> to vector<2x64xf32>
    %287 = arith.negf %286 : vector<2x64xf32>
    %288 = math.exp %287 : vector<2x64xf32>
    %cst_53 = arith.constant 1.000000e+00 : f32
    %289 = vector.broadcast %cst_53 : f32 to vector<2x64xf32>
    %290 = arith.addf %289, %288 : vector<2x64xf32>
    %291 = arith.divf %289, %290 : vector<2x64xf32>
    %292 = vector.extract_strided_slice %285 {offsets = [0, 64], sizes = [2, 64], strides = [1, 1]} : vector<2x192xf32> to vector<2x64xf32>
    %293 = arith.negf %292 : vector<2x64xf32>
    %294 = math.exp %293 : vector<2x64xf32>
    %cst_54 = arith.constant 1.000000e+00 : f32
    %295 = vector.broadcast %cst_54 : f32 to vector<2x64xf32>
    %296 = arith.addf %295, %294 : vector<2x64xf32>
    %297 = arith.divf %295, %296 : vector<2x64xf32>
    %298 = vector.extract_strided_slice %281 {offsets = [0, 128], sizes = [2, 64], strides = [1, 1]} : vector<2x192xf32> to vector<2x64xf32>
    %299 = vector.extract_strided_slice %284 {offsets = [0, 128], sizes = [2, 64], strides = [1, 1]} : vector<2x192xf32> to vector<2x64xf32>
    %300 = arith.mulf %291, %299 : vector<2x64xf32>
    %301 = arith.addf %298, %300 : vector<2x64xf32>
    %302 = math.tanh %301 : vector<2x64xf32>
    %cst_55 = arith.constant 1.000000e+00 : f32
    %303 = vector.broadcast %cst_55 : f32 to vector<2x64xf32>
    %304 = arith.subf %303, %297 : vector<2x64xf32>
    %305 = arith.mulf %304, %302 : vector<2x64xf32>
    %306 = arith.mulf %297, %274 : vector<2x64xf32>
    %307 = arith.addf %305, %306 : vector<2x64xf32>
    %c0_56 = arith.constant 0 : index
    %c0_57 = arith.constant 0 : index
    %308 = vector.load %arg10[%c0_56, %c0_57] : memref<64x30xf32, #tpu.memory_space<vmem>>, vector<64x30xf32>
    %cst_58 = arith.constant dense<0.000000e+00> : vector<2x30xf32>
    %309 = tpu.matmul %307, %308, %cst_58 {dimension_numbers = #tpu.dot_dimension_numbers<[1], [0], [0], [1], [0, 0, 1, 1], [], []>} : vector<2x64xf32>, vector<64x30xf32>, vector<2x30xf32> -> vector<2x30xf32>
    %c0_59 = arith.constant 0 : index
    %c0_60 = arith.constant 0 : index
    %310 = vector.load %arg11[%c0_59, %c0_60] : memref<1x30xf32, #tpu.memory_space<vmem>>, vector<1x30xf32>
    %311 = vector.broadcast %310 : vector<1x30xf32> to vector<2x30xf32>
    %312 = arith.addf %309, %311 : vector<2x30xf32>
    %c0_61 = arith.constant 0 : index
    %c0_62 = arith.constant 0 : index
    %313 = vector.load %arg12[%c0_61, %c0_62] : memref<2x30xf32, #tpu.memory_space<vmem>>, vector<2x30xf32>
    tpu.vector_store %arg12[%c0_61, %c0_62], %312 {strides = array<i32>} : memref<2x30xf32, #tpu.memory_space<vmem>>, vector<2x30xf32>,
    return
  }
}

</mosaic_0001>

<llo_original>
// kernel: cnn_rnn_forward.1
$region0: #{cnn_rnn_forward.1}
  #allocation0 [shape = 'u32[]', space=smem, size = 0x4, offset = 0x4, fixed_abs, tag = 'smem constant byte address 0x4 - core index']
  #allocation1 [shape = 'u32[144,128]{1,0:T(1,128)}', space=vmem, size = 0x12000, scoped, tag = 'internal scratch']
  %s0 = inlined_call_operand.vmem [shape: f32[8,64], index: 0, kind: input, shape index: {}]
  %s1 = inlined_call_operand.vmem [shape: f32[1,192], index: 1, kind: input, shape index: {}]
  %s2 = inlined_call_operand.vmem [shape: f32[64,192], index: 2, kind: input, shape index: {}]
  %s3 = inlined_call_operand.hbm [shape: f32[64,192], index: 3, kind: input, shape index: {}]
  %s4 = inlined_call_operand.vmem [shape: f32[1,192], index: 4, kind: input, shape index: {}]
  %s5 = inlined_call_operand.vmem [shape: f32[1,192], index: 5, kind: input, shape index: {}]
  %s6 = inlined_call_operand.hbm [shape: f32[64,192], index: 6, kind: input, shape index: {}]
  %s7 = inlined_call_operand.hbm [shape: f32[64,192], index: 7, kind: input, shape index: {}]
  %s8 = inlined_call_operand.vmem [shape: f32[1,192], index: 8, kind: input, shape index: {}]
  %s9 = inlined_call_operand.vmem [shape: f32[1,192], index: 9, kind: input, shape index: {}]
  %s10 = inlined_call_operand.vmem [shape: f32[64,30], index: 10, kind: input, shape index: {}]
  %s11 = inlined_call_operand.vmem [shape: f32[1,30], index: 11, kind: input, shape index: {}]
  %s12 = inlined_call_operand.hbm [shape: f32[2,30], index: 12, kind: output, shape index: {}]
  %s13 = sld [smem:[#allocation0]]
  $region70: #{cnn_rnn_forward.1} parent=0
    _
  %s15 = ssub.s32 1, %s13
  %s16 = scalar_select 0, %s15, %s13
  $region1: #{cnn_rnn_forward.1} parent=0
    #allocation2 [shape = 'u8[65536]{0}', space=vmem, size = 0x10000, scoped, tag = 'input window, operand 3, single buffered']
    #allocation3 [shape = 's32[1]{0}', space=sflag, size = 0x4, scoped, tag = 'scoped memory for cnn_rnn_forward.1']
    #allocation4 [shape = 's32[1]{0}', space=sflag, size = 0x4, scoped, tag = 'scoped memory for cnn_rnn_forward.1']
    #allocation5 [shape = 'u8[65536]{0}', space=vmem, size = 0x10000, scoped, tag = 'input window, operand 6, single buffered']
    #allocation6 [shape = 's32[1]{0}', space=sflag, size = 0x4, scoped, tag = 'scoped memory for cnn_rnn_forward.1']
    #allocation7 [shape = 'u8[65536]{0}', space=vmem, size = 0x10000, scoped, tag = 'input window, operand 7, single buffered']
    #allocation8 [shape = 'u8[1024]{0}', space=vmem, size = 0x400, scoped, tag = 'output window, operand 0, single buffered']
    %17 = vsyncpa [#allocation3], 0
    %18 = vsyncpa [#allocation6], 0
    %19 = vsyncpa [#allocation4], 0
    // Predicated region
    $region2: #{cnn_rnn_forward.1} parent=1 // pred_check
      _
    $region3: #{cnn_rnn_forward.1} parent=1 // pred_check_branch
      %21 = sbr.rel (0) target = $region5
    $region4: #{cnn_rnn_forward.1} parent=1 // pred_region
      _
    $region5: #{cnn_rnn_forward.1} parent=1 // pred_fallthru
      _
    // Predicated region
    $region6: #{cnn_rnn_forward.1} parent=1 // pred_check
      _
    $region7: #{cnn_rnn_forward.1} parent=1 // pred_check_branch
      %23 = sbr.rel (0) target = $region9
    $region8: #{cnn_rnn_forward.1} parent=1 // pred_region
      _
    $region9: #{cnn_rnn_forward.1} parent=1 // pred_fallthru
      _
    // Predicated region
    $region10: #{cnn_rnn_forward.1} parent=1 // pred_check
      _
    $region11: #{cnn_rnn_forward.1} parent=1 // pred_check_branch
      %25 = sbr.rel (0) target = $region13
    $region12: #{cnn_rnn_forward.1} parent=1 // pred_region
      _
    $region13: #{cnn_rnn_forward.1} parent=1 // pred_fallthru
      _
    // Predicated region
    $region14: #{cnn_rnn_forward.1} parent=1 // pred_check
      _
    $region15: #{cnn_rnn_forward.1} parent=1 // pred_check_branch
      %27 = sbr.rel (0) target = $region17
    $region16: #{cnn_rnn_forward.1} parent=1 // pred_region
      %s29 = ssub.s32 2048, 2048
      %30 = vsyncadd [#allocation3], %s29
      %s31 = sshll.u32 [#allocation2], 4
      %s32 = int_to_ptr.vmem [resolvable:$true] %s31
      %37 = dma.hbm_to_vmem [thread:$0]  %s3, 2048, %s32, [#allocation3], 256, 256, 16
    $region17: #{cnn_rnn_forward.1} parent=1 // pred_fallthru
      _
    // Predicated region
    $region18: #{cnn_rnn_forward.1} parent=1 // pred_check
      _
    $region19: #{cnn_rnn_forward.1} parent=1 // pred_check_branch
      %39 = sbr.rel (0) target = $region21
    $region20: #{cnn_rnn_forward.1} parent=1 // pred_region
      _
    $region21: #{cnn_rnn_forward.1} parent=1 // pred_fallthru
      _
    // Predicated region
    $region22: #{cnn_rnn_forward.1} parent=1 // pred_check
      _
    $region23: #{cnn_rnn_forward.1} parent=1 // pred_check_branch
      %41 = sbr.rel (0) target = $region25
    $region24: #{cnn_rnn_forward.1} parent=1 // pred_region
      _
    $region25: #{cnn_rnn_forward.1} parent=1 // pred_fallthru
      _
    // Predicated region
    $region26: #{cnn_rnn_forward.1} parent=1 // pred_check
      _
    $region27: #{cnn_rnn_forward.1} parent=1 // pred_check_branch
      %43 = sbr.rel (0) target = $region29
    $region28: #{cnn_rnn_forward.1} parent=1 // pred_region
      %s45 = ssub.s32 2048, 2048
      %46 = vsyncadd [#allocation6], %s45
      %s47 = sshll.u32 [#allocation5], 4
      %s48 = int_to_ptr.vmem [resolvable:$true] %s47
      %53 = dma.hbm_to_vmem [thread:$0]  %s6, 2048, %s48, [#allocation6], 256, 256, 16
    $region29: #{cnn_rnn_forward.1} parent=1 // pred_fallthru
      _
    // Predicated region
    $region30: #{cnn_rnn_forward.1} parent=1 // pred_check
      _
    $region31: #{cnn_rnn_forward.1} parent=1 // pred_check_branch
      %55 = sbr.rel (0) target = $region33
    $region32: #{cnn_rnn_forward.1} parent=1 // pred_region
      %s57 = ssub.s32 2048, 2048
      %58 = vsyncadd [#allocation6], %s57
      %s59 = sshll.u32 [#allocation7], 4
      %s60 = int_to_ptr.vmem [resolvable:$true] %s59
      %65 = dma.hbm_to_vmem [thread:$0]  %s7, 2048, %s60, [#allocation6], 256, 256, 16
    $region33: #{cnn_rnn_forward.1} parent=1 // pred_fallthru
      _
    // Predicated region
    $region34: #{cnn_rnn_forward.1} parent=1 // pred_check
      _
    $region35: #{cnn_rnn_forward.1} parent=1 // pred_check_branch
      %67 = sbr.rel (0) target = $region37
    $region36: #{cnn_rnn_forward.1} parent=1 // pred_region
      _
    $region37: #{cnn_rnn_forward.1} parent=1 // pred_fallthru
      _
    // Predicated region
    $region38: #{cnn_rnn_forward.1} parent=1 // pred_check
      _
    $region39: #{cnn_rnn_forward.1} parent=1 // pred_check_branch
      %69 = sbr.rel (0) target = $region41
    $region40: #{cnn_rnn_forward.1} parent=1 // pred_region
      _
    $region41: #{cnn_rnn_forward.1} parent=1 // pred_fallthru
      _
    // Predicated region
    $region42: #{cnn_rnn_forward.1} parent=1 // pred_check
      _
    $region43: #{cnn_rnn_forward.1} parent=1 // pred_check_branch
      %71 = sbr.rel (0) target = $region45
    $region44: #{cnn_rnn_forward.1} parent=1 // pred_region
      _
    $region45: #{cnn_rnn_forward.1} parent=1 // pred_fallthru
      _
    // Predicated region
    $region46: #{cnn_rnn_forward.1} parent=1 // pred_check
      _
    $region47: #{cnn_rnn_forward.1} parent=1 // pred_check_branch
      %73 = sbr.rel (0) target = $region49
    $region48: #{cnn_rnn_forward.1} parent=1 // pred_region
      _
    $region49: #{cnn_rnn_forward.1} parent=1 // pred_fallthru
      _
    // Predicated region
    $region50: #{cnn_rnn_forward.1} parent=1 // pred_check
      _
    $region51: #{cnn_rnn_forward.1} parent=1 // pred_check_branch
      %75 = sbr.rel (0) target = $region53
    $region52: #{cnn_rnn_forward.1} parent=1 // pred_region
      %76 = dma.done [#allocation3], 2048
    $region53: #{cnn_rnn_forward.1} parent=1 // pred_fallthru
      _
    // Predicated region
    $region54: #{cnn_rnn_forward.1} parent=1 // pred_check
      _
    $region55: #{cnn_rnn_forward.1} parent=1 // pred_check_branch
      %78 = sbr.rel (0) target = $region57
    $region56: #{cnn_rnn_forward.1} parent=1 // pred_region
      %79 = dma.done [#allocation6], 2048
    $region57: #{cnn_rnn_forward.1} parent=1 // pred_fallthru
      _
    // Predicated region
    $region58: #{cnn_rnn_forward.1} parent=1 // pred_check
      _
    $region59: #{cnn_rnn_forward.1} parent=1 // pred_check_branch
      %81 = sbr.rel (0) target = $region61
    $region60: #{cnn_rnn_forward.1} parent=1 // pred_region
      %82 = dma.done [#allocation6], 2048
    $region61: #{cnn_rnn_forward.1} parent=1 // pred_fallthru
      _
    %v83 = vld [vmem:[%s1] sm:$0x3]
    %v84 = vsub.f32 1.0, %v83
    %v85 = vld [vmem:[%s0] sm:$0xff]
    %v86 = vld [vmem:[%s2] sm:$0xff]
    %v87 = vld [vmem:[%s2 + $0x8] sm:$0xff]
    %v88 = vld [vmem:[%s2 + $0x10] sm:$0xff]
    %v89 = vld [vmem:[%s2 + $0x18] sm:$0xff]
    %v90 = vld [vmem:[%s2 + $0x20] sm:$0xff]
    %v91 = vld [vmem:[%s2 + $0x28] sm:$0xff]
    %v92 = vld [vmem:[%s2 + $0x30] sm:$0xff]
    %v93 = vld [vmem:[%s2 + $0x38] sm:$0xff]
    %v94 = vld [vmem:[%s2 + $0x40] sm:$0xff]
    %v95 = vld [vmem:[%s2 + $0x48] sm:$0xff]
    %v96 = vld [vmem:[%s2 + $0x50] sm:$0xff]
    %v97 = vld [vmem:[%s2 + $0x58] sm:$0xff]
    %v98 = vld [vmem:[%s2 + $0x60] sm:$0xff]
    %v99 = vld [vmem:[%s2 + $0x68] sm:$0xff]
    %v100 = vld [vmem:[%s2 + $0x70] sm:$0xff]
    %v101 = vld [vmem:[%s2 + $0x78] sm:$0xff]
    %v102 = vld [vmem:[#allocation2] sm:$0xff]
    %v103 = vld [vmem:[#allocation2 + $0x8] sm:$0xff]
    %v104 = vld [vmem:[#allocation2 + $0x10] sm:$0xff]
    %v105 = vld [vmem:[#allocation2 + $0x18] sm:$0xff]
    %v106 = vld [vmem:[#allocation2 + $0x20] sm:$0xff]
    %v107 = vld [vmem:[#allocation2 + $0x28] sm:$0xff]
    %v108 = vld [vmem:[#allocation2 + $0x30] sm:$0xff]
    %v109 = vld [vmem:[#allocation2 + $0x38] sm:$0xff]
    %v110 = vld [vmem:[#allocation2 + $0x40] sm:$0xff]
    %v111 = vld [vmem:[#allocation2 + $0x48] sm:$0xff]
    %v112 = vld [vmem:[#allocation2 + $0x50] sm:$0xff]
    %v113 = vld [vmem:[#allocation2 + $0x58] sm:$0xff]
    %v114 = vld [vmem:[#allocation2 + $0x60] sm:$0xff]
    %v115 = vld [vmem:[#allocation2 + $0x68] sm:$0xff]
    %v116 = vld [vmem:[#allocation2 + $0x70] sm:$0xff]
    %v117 = vld [vmem:[#allocation2 + $0x78] sm:$0xff]
    %v118 = vld [vmem:[%s4] sm:$0x3]
    %v119 = vld [vmem:[%s5] sm:$0x3]
    %v121 = vlaneseq
    %v122 = vshrl.u32 %v121, 7
    %v123 = vsub.s32 0, %v122
    %v124 = vrot.slane %v118, %v123
    %v125 = vlaneseq
    %v126 = vshrl.u32 %v125, 7
    %v127 = vsub.s32 1, %v126
    %v128 = vrot.slane %v118, %v127
    %vm131 = vcmask 523264
    %v133 = vsel %vm131, %v85, 0
    %135 = vmatprep.subr.mxu0 %v87
    %136 = vmatpush1.msra.mxu0 %v86
    %137 = vmatprep.subr.mxu0 %v89
    %138 = vmatpush1.msra.mxu0 %v88
    %139 = vmatprep.subr.mxu0 %v91
    %140 = vmatpush1.msra.mxu0 %v90
    %141 = vmatprep.subr.mxu0 %v93
    %142 = vmatpush1.msra.mxu0 %v92
    %143 = vmatprep.subr.mxu0 %v95
    %144 = vmatpush1.msra.mxu0 %v94
    %145 = vmatprep.subr.mxu0 %v97
    %146 = vmatpush1.msra.mxu0 %v96
    %147 = vmatprep.subr.mxu0 %v99
    %148 = vmatpush1.msra.mxu0 %v98
    %149 = vmatprep.subr.mxu0 %v101
    %150 = vmatpush1.msra.mxu0 %v100
    %151 = vmatprep.subr.mxu0 0.0
    %152 = vmatpush1.msra.mxu0 0.0
    %153 = vmatprep.subr.mxu0 0.0
    %154 = vmatpush1.msra.mxu0 0.0
    %155 = vmatprep.subr.mxu0 0.0
    %156 = vmatpush1.msra.mxu0 0.0
    %157 = vmatprep.subr.mxu0 0.0
    %158 = vmatpush1.msra.mxu0 0.0
    %159 = vmatprep.subr.mxu0 0.0
    %160 = vmatpush1.msra.mxu0 0.0
    %161 = vmatprep.subr.mxu0 0.0
    %162 = vmatpush1.msra.mxu0 0.0
    %163 = vmatprep.subr.mxu0 0.0
    %164 = vmatpush1.msra.mxu0 0.0
    %165 = vmatprep.subr.mxu0 0.0
    %166 = vmatpush1.msra.mxu0 0.0
    %167 = vmatprep.subr.mxu0 0.0
    %168 = vmatpush1.msra.mxu0 0.0
    %169 = vmatprep.subr.mxu0 0.0
    %170 = vmatpush1.msra.mxu0 0.0
    %171 = vmatprep.subr.mxu0 0.0
    %172 = vmatpush1.msra.mxu0 0.0
    %173 = vmatprep.subr.mxu0 0.0
    %174 = vmatpush1.msra.mxu0 0.0
    %175 = vmatprep.subr.mxu0 0.0
    %176 = vmatpush1.msra.mxu0 0.0
    %177 = vmatprep.subr.mxu0 0.0
    %178 = vmatpush1.msra.mxu0 0.0
    %179 = vmatprep.subr.mxu0 0.0
    %180 = vmatpush1.msra.mxu0 0.0
    %181 = vmatprep.subr.mxu0 0.0
    %182 = vmatpush1.msra.mxu0 0.0
    %183 = vmatprep.subr.mxu0 0.0
    %184 = vmatpush1.msra.mxu0 0.0
    %185 = vmatprep.subr.mxu0 0.0
    %186 = vmatpush1.msra.mxu0 0.0
    %187 = vmatprep.subr.mxu0 0.0
    %188 = vmatpush1.msra.mxu0 0.0
    %189 = vmatprep.subr.mxu0 0.0
    %190 = vmatpush1.msra.mxu0 0.0
    %191 = vmatprep.subr.mxu0 0.0
    %192 = vmatpush1.msra.mxu0 0.0
    %193 = vmatprep.subr.mxu0 0.0
    %194 = vmatpush1.msra.mxu0 0.0
    %195 = vmatprep.subr.mxu0 0.0
    %196 = vmatpush1.msra.mxu0 0.0
    %197 = vmatprep.subr.mxu0 0.0
    %198 = vmatpush1.msra.mxu0 0.0
    %199 = vmatprep.mubr.f32.mxu0 0.0
    %200 = vmatmul.mubr.f32.gmra.mrb[0].mxu0 %v133
    %v201 = vpop.f32.mrb[0].mxu0
    %v202 = vadd.f32 %v124, %v201
    %v203 = vpop.f32.mrb[0].mxu0
    %v204 = vadd.f32 %v128, %v203
    %205 = vdwg.mxu0
    %v207 = vlaneseq
    %v208 = vshrl.u32 %v207, 7
    %v209 = vsub.s32 0, %v208
    %v210 = vrot.slane %v83, %v209
    %v211 = vlaneseq
    %v212 = vshrl.u32 %v211, 7
    %v213 = vsub.s32 1, %v212
    %v214 = vrot.slane %v83, %v213
    %v217 = vmul.f32 %v210, %v202
    %v218 = vmul.f32 %v214, %v204
    %v220 = vlaneseq
    %v221 = vshrl.u32 %v220, 7
    %v222 = vsub.s32 0, %v221
    %v223 = vrot.slane %v84, %v222
    %v224 = vlaneseq
    %v225 = vshrl.u32 %v224, 7
    %v226 = vsub.s32 1, %v225
    %v227 = vrot.slane %v84, %v226
    %v230 = vmul.f32 %v223, %v202
    %v231 = vmul.f32 %v227, %v204
    %v234 = vrot.slane %v230, 6
    %v235 = vrot.slane %v231, 6
    %v238 = vadd.f32 %v217, %v234
    %v239 = vadd.f32 %v218, %v235
    %v241 = vlaneseq
    %v242 = vshrl.u32 %v241, 7
    %v243 = vsub.s32 0, %v242
    %v244 = vrot.slane %v119, %v243
    %v245 = vlaneseq
    %v246 = vshrl.u32 %v245, 7
    %v247 = vsub.s32 1, %v246
    %v248 = vrot.slane %v119, %v247
    %v252 = vsel %vm131, 0.0, 0
    %254 = vmatprep.subr.mxu0 %v103
    %255 = vmatpush1.msra.mxu0 %v102
    %256 = vmatprep.subr.mxu0 %v105
    %257 = vmatpush1.msra.mxu0 %v104
    %258 = vmatprep.subr.mxu0 %v107
    %259 = vmatpush1.msra.mxu0 %v106
    %260 = vmatprep.subr.mxu0 %v109
    %261 = vmatpush1.msra.mxu0 %v108
    %262 = vmatprep.subr.mxu0 %v111
    %263 = vmatpush1.msra.mxu0 %v110
    %264 = vmatprep.subr.mxu0 %v113
    %265 = vmatpush1.msra.mxu0 %v112
    %266 = vmatprep.subr.mxu0 %v115
    %267 = vmatpush1.msra.mxu0 %v114
    %268 = vmatprep.subr.mxu0 %v117
    %269 = vmatpush1.msra.mxu0 %v116
    %270 = vmatprep.subr.mxu0 0.0
    %271 = vmatpush1.msra.mxu0 0.0
    %272 = vmatprep.subr.mxu0 0.0
    %273 = vmatpush1.msra.mxu0 0.0
    %274 = vmatprep.subr.mxu0 0.0
    %275 = vmatpush1.msra.mxu0 0.0
    %276 = vmatprep.subr.mxu0 0.0
    %277 = vmatpush1.msra.mxu0 0.0
    %278 = vmatprep.subr.mxu0 0.0
    %279 = vmatpush1.msra.mxu0 0.0
    %280 = vmatprep.subr.mxu0 0.0
    %281 = vmatpush1.msra.mxu0 0.0
    %282 = vmatprep.subr.mxu0 0.0
    %283 = vmatpush1.msra.mxu0 0.0
    %284 = vmatprep.subr.mxu0 0.0
    %285 = vmatpush1.msra.mxu0 0.0
    %286 = vmatprep.subr.mxu0 0.0
    %287 = vmatpush1.msra.mxu0 0.0
    %288 = vmatprep.subr.mxu0 0.0
    %289 = vmatpush1.msra.mxu0 0.0
    %290 = vmatprep.subr.mxu0 0.0
    %291 = vmatpush1.msra.mxu0 0.0
    %292 = vmatprep.subr.mxu0 0.0
    %293 = vmatpush1.msra.mxu0 0.0
    %294 = vmatprep.subr.mxu0 0.0
    %295 = vmatpush1.msra.mxu0 0.0
    %296 = vmatprep.subr.mxu0 0.0
    %297 = vmatpush1.msra.mxu0 0.0
    %298 = vmatprep.subr.mxu0 0.0
    %299 = vmatpush1.msra.mxu0 0.0
    %300 = vmatprep.subr.mxu0 0.0
    %301 = vmatpush1.msra.mxu0 0.0
    %302 = vmatprep.subr.mxu0 0.0
    %303 = vmatpush1.msra.mxu0 0.0
    %304 = vmatprep.subr.mxu0 0.0
    %305 = vmatpush1.msra.mxu0 0.0
    %306 = vmatprep.subr.mxu0 0.0
    %307 = vmatpush1.msra.mxu0 0.0
    %308 = vmatprep.subr.mxu0 0.0
    %309 = vmatpush1.msra.mxu0 0.0
    %310 = vmatprep.subr.mxu0 0.0
    %311 = vmatpush1.msra.mxu0 0.0
    %312 = vmatprep.subr.mxu0 0.0
    %313 = vmatpush1.msra.mxu0 0.0
    %314 = vmatprep.subr.mxu0 0.0
    %315 = vmatpush1.msra.mxu0 0.0
    %316 = vmatprep.subr.mxu0 0.0
    %317 = vmatpush1.msra.mxu0 0.0
    %318 = vmatprep.mubr.f32.mxu0 0.0
    %319 = vmatmul.mubr.f32.gmra.mrb[0].mxu0 %v252
    %v320 = vpop.f32.mrb[0].mxu0
    %v321 = vadd.f32 %v244, %v320
    %v322 = vpop.f32.mrb[0].mxu0
    %v323 = vadd.f32 %v248, %v322
    %324 = vdwg.mxu0
    %v325 = vadd.f32 %v238, %v321
    %v326 = vxor.u32 %v325, 2147483648
    %v327 = vmul.f32 %v326, 1.442695
    %v328 = vpow.pop %v327
    %v329 = vadd.f32 %v328, 1.0
    %v330 = vrcp.pop %v329
    %v331 = vmul.f32 1.0, %v330
    %v332 = vmul.f32 %v331, %v323
    %v333 = vadd.f32 %v239, %v332
    %v334 = vtanh.pop %v333
    %v335 = vsub.f32 1.0, %v331
    %337 = vrot.lane.b32.xlu0 %v334, 64
    %v338 = vpop.permute.xlu0 %337
    %v340 = vmul.f32 %v335, %v338
    %v341 = vmul.f32 %v331, 0.0
    %v342 = vadd.f32 %v340, %v341
    %v343 = vrot.slane %v230, 2
    %v344 = vrot.slane %v231, 2
    %v347 = vadd.f32 %v217, %v343
    %v348 = vadd.f32 %v218, %v344
    %350 = vrot.lane.b32.xlu0 %v342, 64
    %v351 = vpop.permute.xlu0 %350
    %v352 = vsel %vm131, %v351, 0
    %354 = vmatprep.subr.mxu0 %v103
    %355 = vmatpush1.msra.mxu0 %v102
    %356 = vmatprep.subr.mxu0 %v105
    %357 = vmatpush1.msra.mxu0 %v104
    %358 = vmatprep.subr.mxu0 %v107
    %359 = vmatpush1.msra.mxu0 %v106
    %360 = vmatprep.subr.mxu0 %v109
    %361 = vmatpush1.msra.mxu0 %v108
    %362 = vmatprep.subr.mxu0 %v111
    %363 = vmatpush1.msra.mxu0 %v110
    %364 = vmatprep.subr.mxu0 %v113
    %365 = vmatpush1.msra.mxu0 %v112
    %366 = vmatprep.subr.mxu0 %v115
    %367 = vmatpush1.msra.mxu0 %v114
    %368 = vmatprep.subr.mxu0 %v117
    %369 = vmatpush1.msra.mxu0 %v116
    %370 = vmatprep.subr.mxu0 0.0
    %371 = vmatpush1.msra.mxu0 0.0
    %372 = vmatprep.subr.mxu0 0.0
    %373 = vmatpush1.msra.mxu0 0.0
    %374 = vmatprep.subr.mxu0 0.0
    %375 = vmatpush1.msra.mxu0 0.0
    %376 = vmatprep.subr.mxu0 0.0
    %377 = vmatpush1.msra.mxu0 0.0
    %378 = vmatprep.subr.mxu0 0.0
    %379 = vmatpush1.msra.mxu0 0.0
    %380 = vmatprep.subr.mxu0 0.0
    %381 = vmatpush1.msra.mxu0 0.0
    %382 = vmatprep.subr.mxu0 0.0
    %383 = vmatpush1.msra.mxu0 0.0
    %384 = vmatprep.subr.mxu0 0.0
    %385 = vmatpush1.msra.mxu0 0.0
    %386 = vmatprep.subr.mxu0 0.0
    %387 = vmatpush1.msra.mxu0 0.0
    %388 = vmatprep.subr.mxu0 0.0
    %389 = vmatpush1.msra.mxu0 0.0
    %390 = vmatprep.subr.mxu0 0.0
    %391 = vmatpush1.msra.mxu0 0.0
    %392 = vmatprep.subr.mxu0 0.0
    %393 = vmatpush1.msra.mxu0 0.0
    %394 = vmatprep.subr.mxu0 0.0
    %395 = vmatpush1.msra.mxu0 0.0
    %396 = vmatprep.subr.mxu0 0.0
    %397 = vmatpush1.msra.mxu0 0.0
    %398 = vmatprep.subr.mxu0 0.0
    %399 = vmatpush1.msra.mxu0 0.0
    %400 = vmatprep.subr.mxu0 0.0
    %401 = vmatpush1.msra.mxu0 0.0
    %402 = vmatprep.subr.mxu0 0.0
    %403 = vmatpush1.msra.mxu0 0.0
    %404 = vmatprep.subr.mxu0 0.0
    %405 = vmatpush1.msra.mxu0 0.0
    %406 = vmatprep.subr.mxu0 0.0
    %407 = vmatpush1.msra.mxu0 0.0
    %408 = vmatprep.subr.mxu0 0.0
    %409 = vmatpush1.msra.mxu0 0.0
    %410 = vmatprep.subr.mxu0 0.0
    %411 = vmatpush1.msra.mxu0 0.0
    %412 = vmatprep.subr.mxu0 0.0
    %413 = vmatpush1.msra.mxu0 0.0
    %414 = vmatprep.subr.mxu0 0.0
    %415 = vmatpush1.msra.mxu0 0.0
    %416 = vmatprep.subr.mxu0 0.0
    %417 = vmatpush1.msra.mxu0 0.0
    %418 = vmatprep.mubr.f32.mxu0 0.0
    %419 = vmatmul.mubr.f32.gmra.mrb[0].mxu0 %v352
    %v420 = vpop.f32.mrb[0].mxu0
    %v421 = vadd.f32 %v244, %v420
    %v422 = vpop.f32.mrb[0].mxu0
    %v423 = vadd.f32 %v248, %v422
    %424 = vdwg.mxu0
    %v426 = vrot.slane %v421, 6
    %v428 = vadd.f32 %v347, %v426
    %v429 = vxor.u32 %v428, 2147483648
    %v430 = vmul.f32 %v429, 1.442695
    %v431 = vpow.pop %v430
    %v432 = vadd.f32 %v431, 1.0
    %v433 = vrcp.pop %v432
    %v434 = vmul.f32 1.0, %v433
    %v436 = vrot.slane %v423, 6
    %v438 = vmul.f32 %v434, %v436
    %v439 = vadd.f32 %v348, %v438
    %v440 = vtanh.pop %v439
    %v441 = vsub.f32 1.0, %v434
    %443 = vrot.lane.b32.xlu0 %v440, 64
    %v444 = vpop.permute.xlu0 %443
    %v446 = vmul.f32 %v441, %v444
    %v447 = vrot.slane %v342, 6
    %v449 = vmul.f32 %v434, %v447
    %v450 = vadd.f32 %v446, %v449
    %v452 = vrot.slane %v450, 2
    %453 = vrot.lane.b32.xlu0 %v452, 64
    %v454 = vpop.permute.xlu0 %453
    %v455 = vsel %vm131, %v454, 0
    %457 = vmatprep.subr.mxu0 %v103
    %458 = vmatpush1.msra.mxu0 %v102
    %459 = vmatprep.subr.mxu0 %v105
    %460 = vmatpush1.msra.mxu0 %v104
    %461 = vmatprep.subr.mxu0 %v107
    %462 = vmatpush1.msra.mxu0 %v106
    %463 = vmatprep.subr.mxu0 %v109
    %464 = vmatpush1.msra.mxu0 %v108
    %465 = vmatprep.subr.mxu0 %v111
    %466 = vmatpush1.msra.mxu0 %v110
    %467 = vmatprep.subr.mxu0 %v113
    %468 = vmatpush1.msra.mxu0 %v112
    %469 = vmatprep.subr.mxu0 %v115
    %470 = vmatpush1.msra.mxu0 %v114
    %471 = vmatprep.subr.mxu0 %v117
    %472 = vmatpush1.msra.mxu0 %v116
    %473 = vmatprep.subr.mxu0 0.0
    %474 = vmatpush1.msra.mxu0 0.0
    %475 = vmatprep.subr.mxu0 0.0
    %476 = vmatpush1.msra.mxu0 0.0
    %477 = vmatprep.subr.mxu0 0.0
    %478 = vmatpush1.msra.mxu0 0.0
    %479 = vmatprep.subr.mxu0 0.0
    %480 = vmatpush1.msra.mxu0 0.0
    %481 = vmatprep.subr.mxu0 0.0
    %482 = vmatpush1.msra.mxu0 0.0
    %483 = vmatprep.subr.mxu0 0.0
    %484 = vmatpush1.msra.mxu0 0.0
    %485 = vmatprep.subr.mxu0 0.0
    %486 = vmatpush1.msra.mxu0 0.0
    %487 = vmatprep.subr.mxu0 0.0
    %488 = vmatpush1.msra.mxu0 0.0
    %489 = vmatprep.subr.mxu0 0.0
    %490 = vmatpush1.msra.mxu0 0.0
    %491 = vmatprep.subr.mxu0 0.0
    %492 = vmatpush1.msra.mxu0 0.0
    %493 = vmatprep.subr.mxu0 0.0
    %494 = vmatpush1.msra.mxu0 0.0
    %495 = vmatprep.subr.mxu0 0.0
    %496 = vmatpush1.msra.mxu0 0.0
    %497 = vmatprep.subr.mxu0 0.0
    %498 = vmatpush1.msra.mxu0 0.0
    %499 = vmatprep.subr.mxu0 0.0
    %500 = vmatpush1.msra.mxu0 0.0
    %501 = vmatprep.subr.mxu0 0.0
    %502 = vmatpush1.msra.mxu0 0.0
    %503 = vmatprep.subr.mxu0 0.0
    %504 = vmatpush1.msra.mxu0 0.0
    %505 = vmatprep.subr.mxu0 0.0
    %506 = vmatpush1.msra.mxu0 0.0
    %507 = vmatprep.subr.mxu0 0.0
    %508 = vmatpush1.msra.mxu0 0.0
    %509 = vmatprep.subr.mxu0 0.0
    %510 = vmatpush1.msra.mxu0 0.0
    %511 = vmatprep.subr.mxu0 0.0
    %512 = vmatpush1.msra.mxu0 0.0
    %513 = vmatprep.subr.mxu0 0.0
    %514 = vmatpush1.msra.mxu0 0.0
    %515 = vmatprep.subr.mxu0 0.0
    %516 = vmatpush1.msra.mxu0 0.0
    %517 = vmatprep.subr.mxu0 0.0
    %518 = vmatpush1.msra.mxu0 0.0
    %519 = vmatprep.subr.mxu0 0.0
    %520 = vmatpush1.msra.mxu0 0.0
    %521 = vmatprep.mubr.f32.mxu0 0.0
    %522 = vmatmul.mubr.f32.gmra.mrb[0].mxu0 %v455
    %v523 = vpop.f32.mrb[0].mxu0
    %v524 = vadd.f32 %v244, %v523
    %v525 = vpop.f32.mrb[0].mxu0
    %v526 = vadd.f32 %v248, %v525
    %527 = vdwg.mxu0
    %v529 = vrot.slane %v524, 4
    %v531 = vadd.f32 %v238, %v529
    %v532 = vxor.u32 %v531, 2147483648
    %v533 = vmul.f32 %v532, 1.442695
    %v534 = vpow.pop %v533
    %v535 = vadd.f32 %v534, 1.0
    %v536 = vrcp.pop %v535
    %v537 = vmul.f32 1.0, %v536
    %v539 = vrot.slane %v526, 4
    %v541 = vmul.f32 %v537, %v539
    %v542 = vadd.f32 %v239, %v541
    %v543 = vtanh.pop %v542
    %v544 = vsub.f32 1.0, %v537
    %546 = vrot.lane.b32.xlu0 %v543, 64
    %v547 = vpop.permute.xlu0 %546
    %v549 = vmul.f32 %v544, %v547
    %v550 = vrot.slane %v450, 6
    %v552 = vmul.f32 %v537, %v550
    %v553 = vadd.f32 %v549, %v552
    %v555 = vrot.slane %v553, 4
    %556 = vrot.lane.b32.xlu0 %v555, 64
    %v557 = vpop.permute.xlu0 %556
    %v558 = vsel %vm131, %v557, 0
    %560 = vmatprep.subr.mxu0 %v103
    %561 = vmatpush1.msra.mxu0 %v102
    %562 = vmatprep.subr.mxu0 %v105
    %563 = vmatpush1.msra.mxu0 %v104
    %564 = vmatprep.subr.mxu0 %v107
    %565 = vmatpush1.msra.mxu0 %v106
    %566 = vmatprep.subr.mxu0 %v109
    %567 = vmatpush1.msra.mxu0 %v108
    %568 = vmatprep.subr.mxu0 %v111
    %569 = vmatpush1.msra.mxu0 %v110
    %570 = vmatprep.subr.mxu0 %v113
    %571 = vmatpush1.msra.mxu0 %v112
    %572 = vmatprep.subr.mxu0 %v115
    %573 = vmatpush1.msra.mxu0 %v114
    %574 = vmatprep.subr.mxu0 %v117
    %575 = vmatpush1.msra.mxu0 %v116
    %576 = vmatprep.subr.mxu0 0.0
    %577 = vmatpush1.msra.mxu0 0.0
    %578 = vmatprep.subr.mxu0 0.0
    %579 = vmatpush1.msra.mxu0 0.0
    %580 = vmatprep.subr.mxu0 0.0
    %581 = vmatpush1.msra.mxu0 0.0
    %582 = vmatprep.subr.mxu0 0.0
    %583 = vmatpush1.msra.mxu0 0.0
    %584 = vmatprep.subr.mxu0 0.0
    %585 = vmatpush1.msra.mxu0 0.0
    %586 = vmatprep.subr.mxu0 0.0
    %587 = vmatpush1.msra.mxu0 0.0
    %588 = vmatprep.subr.mxu0 0.0
    %589 = vmatpush1.msra.mxu0 0.0
    %590 = vmatprep.subr.mxu0 0.0
    %591 = vmatpush1.msra.mxu0 0.0
    %592 = vmatprep.subr.mxu0 0.0
    %593 = vmatpush1.msra.mxu0 0.0
    %594 = vmatprep.subr.mxu0 0.0
    %595 = vmatpush1.msra.mxu0 0.0
    %596 = vmatprep.subr.mxu0 0.0
    %597 = vmatpush1.msra.mxu0 0.0
    %598 = vmatprep.subr.mxu0 0.0
    %599 = vmatpush1.msra.mxu0 0.0
    %600 = vmatprep.subr.mxu0 0.0
    %601 = vmatpush1.msra.mxu0 0.0
    %602 = vmatprep.subr.mxu0 0.0
    %603 = vmatpush1.msra.mxu0 0.0
    %604 = vmatprep.subr.mxu0 0.0
    %605 = vmatpush1.msra.mxu0 0.0
    %606 = vmatprep.subr.mxu0 0.0
    %607 = vmatpush1.msra.mxu0 0.0
    %608 = vmatprep.subr.mxu0 0.0
    %609 = vmatpush1.msra.mxu0 0.0
    %610 = vmatprep.subr.mxu0 0.0
    %611 = vmatpush1.msra.mxu0 0.0
    %612 = vmatprep.subr.mxu0 0.0
    %613 = vmatpush1.msra.mxu0 0.0
    %614 = vmatprep.subr.mxu0 0.0
    %615 = vmatpush1.msra.mxu0 0.0
    %616 = vmatprep.subr.mxu0 0.0
    %617 = vmatpush1.msra.mxu0 0.0
    %618 = vmatprep.subr.mxu0 0.0
    %619 = vmatpush1.msra.mxu0 0.0
    %620 = vmatprep.subr.mxu0 0.0
    %621 = vmatpush1.msra.mxu0 0.0
    %622 = vmatprep.subr.mxu0 0.0
    %623 = vmatpush1.msra.mxu0 0.0
    %624 = vmatprep.mubr.f32.mxu0 0.0
    %625 = vmatmul.mubr.f32.gmra.mrb[0].mxu0 %v558
    %v626 = vpop.f32.mrb[0].mxu0
    %v627 = vadd.f32 %v244, %v626
    %v628 = vpop.f32.mrb[0].mxu0
    %v629 = vadd.f32 %v248, %v628
    %630 = vdwg.mxu0
    %v632 = vrot.slane %v627, 2
    %v634 = vadd.f32 %v347, %v632
    %v635 = vxor.u32 %v634, 2147483648
    %v636 = vmul.f32 %v635, 1.442695
    %v637 = vpow.pop %v636
    %v638 = vadd.f32 %v637, 1.0
    %v639 = vrcp.pop %v638
    %v640 = vmul.f32 1.0, %v639
    %v642 = vrot.slane %v629, 2
    %v644 = vmul.f32 %v640, %v642
    %v645 = vadd.f32 %v348, %v644
    %v646 = vtanh.pop %v645
    %v647 = vsub.f32 1.0, %v640
    %649 = vrot.lane.b32.xlu0 %v646, 64
    %v650 = vpop.permute.xlu0 %649
    %v652 = vmul.f32 %v647, %v650
    %v653 = vrot.slane %v553, 6
    %v655 = vmul.f32 %v640, %v653
    %v656 = vadd.f32 %v652, %v655
    %v658 = vmul.f32 %v210, %v351
    %v660 = vrot.slane %v656, 6
    %661 = vrot.lane.b32.xlu0 %v660, 64
    %v662 = vpop.permute.xlu0 %661
    %v664 = vmul.f32 %v223, %v662
    %v665 = vadd.f32 %v658, %v664
    %v667 = vmul.f32 %v210, %v454
    %v669 = vmul.f32 %v223, %v557
    %v670 = vadd.f32 %v667, %v669
    %v671 = vmul.f32 %v210, %v557
    %v672 = vmul.f32 %v223, %v454
    %v673 = vadd.f32 %v671, %v672
    %v674 = vmul.f32 %v210, %v662
    %v675 = vmul.f32 %v223, %v351
    %v676 = vadd.f32 %v674, %v675
    %v678 = vrot.slane %v670, 6
    %v681 = vrot.slane %v673, 4
    %v684 = vrot.slane %v676, 2
    %vm686 = vcmask 1041408
    %v687 = vsel %vm686, %v665, %v678
    %vm688 = vcmask 1043456
    %v689 = vsel %vm688, %v687, %v681
    %vm690 = vcmask 1045504
    %v691 = vsel %vm690, %v689, %v684
    %v692 = vld [vmem:[#allocation5] sm:$0xff]
    %v693 = vld [vmem:[#allocation5 + $0x8] sm:$0xff]
    %v694 = vld [vmem:[#allocation5 + $0x10] sm:$0xff]
    %v695 = vld [vmem:[#allocation5 + $0x18] sm:$0xff]
    %v696 = vld [vmem:[#allocation5 + $0x20] sm:$0xff]
    %v697 = vld [vmem:[#allocation5 + $0x28] sm:$0xff]
    %v698 = vld [vmem:[#allocation5 + $0x30] sm:$0xff]
    %v699 = vld [vmem:[#allocation5 + $0x38] sm:$0xff]
    %v700 = vld [vmem:[#allocation5 + $0x40] sm:$0xff]
    %v701 = vld [vmem:[#allocation5 + $0x48] sm:$0xff]
    %v702 = vld [vmem:[#allocation5 + $0x50] sm:$0xff]
    %v703 = vld [vmem:[#allocation5 + $0x58] sm:$0xff]
    %v704 = vld [vmem:[#allocation5 + $0x60] sm:$0xff]
    %v705 = vld [vmem:[#allocation5 + $0x68] sm:$0xff]
    %v706 = vld [vmem:[#allocation5 + $0x70] sm:$0xff]
    %v707 = vld [vmem:[#allocation5 + $0x78] sm:$0xff]
    %v708 = vld [vmem:[#allocation7] sm:$0xff]
    %v709 = vld [vmem:[#allocation7 + $0x8] sm:$0xff]
    %v710 = vld [vmem:[#allocation7 + $0x10] sm:$0xff]
    %v711 = vld [vmem:[#allocation7 + $0x18] sm:$0xff]
    %v712 = vld [vmem:[#allocation7 + $0x20] sm:$0xff]
    %v713 = vld [vmem:[#allocation7 + $0x28] sm:$0xff]
    %v714 = vld [vmem:[#allocation7 + $0x30] sm:$0xff]
    %v715 = vld [vmem:[#allocation7 + $0x38] sm:$0xff]
    %v716 = vld [vmem:[#allocation7 + $0x40] sm:$0xff]
    %v717 = vld [vmem:[#allocation7 + $0x48] sm:$0xff]
    %v718 = vld [vmem:[#allocation7 + $0x50] sm:$0xff]
    %v719 = vld [vmem:[#allocation7 + $0x58] sm:$0xff]
    %v720 = vld [vmem:[#allocation7 + $0x60] sm:$0xff]
    %v721 = vld [vmem:[#allocation7 + $0x68] sm:$0xff]
    %v722 = vld [vmem:[#allocation7 + $0x70] sm:$0xff]
    %v723 = vld [vmem:[#allocation7 + $0x78] sm:$0xff]
    %v724 = vld [vmem:[%s8] sm:$0x3]
    %v725 = vld [vmem:[%s9] sm:$0x3]
    %v727 = vlaneseq
    %v728 = vshrl.u32 %v727, 7
    %v729 = vsub.s32 0, %v728
    %v730 = vrot.slane %v724, %v729
    %v731 = vlaneseq
    %v732 = vshrl.u32 %v731, 7
    %v733 = vsub.s32 1, %v732
    %v734 = vrot.slane %v724, %v733
    %v738 = vsel %vm131, %v691, 0
    %740 = vmatprep.subr.mxu0 %v693
    %741 = vmatpush1.msra.mxu0 %v692
    %742 = vmatprep.subr.mxu0 %v695
    %743 = vmatpush1.msra.mxu0 %v694
    %744 = vmatprep.subr.mxu0 %v697
    %745 = vmatpush1.msra.mxu0 %v696
    %746 = vmatprep.subr.mxu0 %v699
    %747 = vmatpush1.msra.mxu0 %v698
    %748 = vmatprep.subr.mxu0 %v701
    %749 = vmatpush1.msra.mxu0 %v700
    %750 = vmatprep.subr.mxu0 %v703
    %751 = vmatpush1.msra.mxu0 %v702
    %752 = vmatprep.subr.mxu0 %v705
    %753 = vmatpush1.msra.mxu0 %v704
    %754 = vmatprep.subr.mxu0 %v707
    %755 = vmatpush1.msra.mxu0 %v706
    %756 = vmatprep.subr.mxu0 0.0
    %757 = vmatpush1.msra.mxu0 0.0
    %758 = vmatprep.subr.mxu0 0.0
    %759 = vmatpush1.msra.mxu0 0.0
    %760 = vmatprep.subr.mxu0 0.0
    %761 = vmatpush1.msra.mxu0 0.0
    %762 = vmatprep.subr.mxu0 0.0
    %763 = vmatpush1.msra.mxu0 0.0
    %764 = vmatprep.subr.mxu0 0.0
    %765 = vmatpush1.msra.mxu0 0.0
    %766 = vmatprep.subr.mxu0 0.0
    %767 = vmatpush1.msra.mxu0 0.0
    %768 = vmatprep.subr.mxu0 0.0
    %769 = vmatpush1.msra.mxu0 0.0
    %770 = vmatprep.subr.mxu0 0.0
    %771 = vmatpush1.msra.mxu0 0.0
    %772 = vmatprep.subr.mxu0 0.0
    %773 = vmatpush1.msra.mxu0 0.0
    %774 = vmatprep.subr.mxu0 0.0
    %775 = vmatpush1.msra.mxu0 0.0
    %776 = vmatprep.subr.mxu0 0.0
    %777 = vmatpush1.msra.mxu0 0.0
    %778 = vmatprep.subr.mxu0 0.0
    %779 = vmatpush1.msra.mxu0 0.0
    %780 = vmatprep.subr.mxu0 0.0
    %781 = vmatpush1.msra.mxu0 0.0
    %782 = vmatprep.subr.mxu0 0.0
    %783 = vmatpush1.msra.mxu0 0.0
    %784 = vmatprep.subr.mxu0 0.0
    %785 = vmatpush1.msra.mxu0 0.0
    %786 = vmatprep.subr.mxu0 0.0
    %787 = vmatpush1.msra.mxu0 0.0
    %788 = vmatprep.subr.mxu0 0.0
    %789 = vmatpush1.msra.mxu0 0.0
    %790 = vmatprep.subr.mxu0 0.0
    %791 = vmatpush1.msra.mxu0 0.0
    %792 = vmatprep.subr.mxu0 0.0
    %793 = vmatpush1.msra.mxu0 0.0
    %794 = vmatprep.subr.mxu0 0.0
    %795 = vmatpush1.msra.mxu0 0.0
    %796 = vmatprep.subr.mxu0 0.0
    %797 = vmatpush1.msra.mxu0 0.0
    %798 = vmatprep.subr.mxu0 0.0
    %799 = vmatpush1.msra.mxu0 0.0
    %800 = vmatprep.subr.mxu0 0.0
    %801 = vmatpush1.msra.mxu0 0.0
    %802 = vmatprep.subr.mxu0 0.0
    %803 = vmatpush1.msra.mxu0 0.0
    %804 = vmatprep.mubr.f32.mxu0 0.0
    %805 = vmatmul.mubr.f32.gmra.mrb[0].mxu0 %v738
    %v806 = vpop.f32.mrb[0].mxu0
    %v807 = vadd.f32 %v730, %v806
    %v808 = vpop.f32.mrb[0].mxu0
    %v809 = vadd.f32 %v734, %v808
    %810 = vdwg.mxu0
    %v811 = vmul.f32 %v210, %v807
    %v812 = vmul.f32 %v214, %v809
    %v813 = vmul.f32 %v223, %v807
    %v814 = vmul.f32 %v227, %v809
    %v817 = vrot.slane %v813, 6
    %v818 = vrot.slane %v814, 6
    %v821 = vadd.f32 %v811, %v817
    %v822 = vadd.f32 %v812, %v818
    %v824 = vlaneseq
    %v825 = vshrl.u32 %v824, 7
    %v826 = vsub.s32 0, %v825
    %v827 = vrot.slane %v725, %v826
    %v828 = vlaneseq
    %v829 = vshrl.u32 %v828, 7
    %v830 = vsub.s32 1, %v829
    %v831 = vrot.slane %v725, %v830
    %834 = vmatprep.subr.mxu0 %v709
    %835 = vmatpush1.msra.mxu0 %v708
    %836 = vmatprep.subr.mxu0 %v711
    %837 = vmatpush1.msra.mxu0 %v710
    %838 = vmatprep.subr.mxu0 %v713
    %839 = vmatpush1.msra.mxu0 %v712
    %840 = vmatprep.subr.mxu0 %v715
    %841 = vmatpush1.msra.mxu0 %v714
    %842 = vmatprep.subr.mxu0 %v717
    %843 = vmatpush1.msra.mxu0 %v716
    %844 = vmatprep.subr.mxu0 %v719
    %845 = vmatpush1.msra.mxu0 %v718
    %846 = vmatprep.subr.mxu0 %v721
    %847 = vmatpush1.msra.mxu0 %v720
    %848 = vmatprep.subr.mxu0 %v723
    %849 = vmatpush1.msra.mxu0 %v722
    %850 = vmatprep.subr.mxu0 0.0
    %851 = vmatpush1.msra.mxu0 0.0
    %852 = vmatprep.subr.mxu0 0.0
    %853 = vmatpush1.msra.mxu0 0.0
    %854 = vmatprep.subr.mxu0 0.0
    %855 = vmatpush1.msra.mxu0 0.0
    %856 = vmatprep.subr.mxu0 0.0
    %857 = vmatpush1.msra.mxu0 0.0
    %858 = vmatprep.subr.mxu0 0.0
    %859 = vmatpush1.msra.mxu0 0.0
    %860 = vmatprep.subr.mxu0 0.0
    %861 = vmatpush1.msra.mxu0 0.0
    %862 = vmatprep.subr.mxu0 0.0
    %863 = vmatpush1.msra.mxu0 0.0
    %864 = vmatprep.subr.mxu0 0.0
    %865 = vmatpush1.msra.mxu0 0.0
    %866 = vmatprep.subr.mxu0 0.0
    %867 = vmatpush1.msra.mxu0 0.0
    %868 = vmatprep.subr.mxu0 0.0
    %869 = vmatpush1.msra.mxu0 0.0
    %870 = vmatprep.subr.mxu0 0.0
    %871 = vmatpush1.msra.mxu0 0.0
    %872 = vmatprep.subr.mxu0 0.0
    %873 = vmatpush1.msra.mxu0 0.0
    %874 = vmatprep.subr.mxu0 0.0
    %875 = vmatpush1.msra.mxu0 0.0
    %876 = vmatprep.subr.mxu0 0.0
    %877 = vmatpush1.msra.mxu0 0.0
    %878 = vmatprep.subr.mxu0 0.0
    %879 = vmatpush1.msra.mxu0 0.0
    %880 = vmatprep.subr.mxu0 0.0
    %881 = vmatpush1.msra.mxu0 0.0
    %882 = vmatprep.subr.mxu0 0.0
    %883 = vmatpush1.msra.mxu0 0.0
    %884 = vmatprep.subr.mxu0 0.0
    %885 = vmatpush1.msra.mxu0 0.0
    %886 = vmatprep.subr.mxu0 0.0
    %887 = vmatpush1.msra.mxu0 0.0
    %888 = vmatprep.subr.mxu0 0.0
    %889 = vmatpush1.msra.mxu0 0.0
    %890 = vmatprep.subr.mxu0 0.0
    %891 = vmatpush1.msra.mxu0 0.0
    %892 = vmatprep.subr.mxu0 0.0
    %893 = vmatpush1.msra.mxu0 0.0
    %894 = vmatprep.subr.mxu0 0.0
    %895 = vmatpush1.msra.mxu0 0.0
    %896 = vmatprep.subr.mxu0 0.0
    %897 = vmatpush1.msra.mxu0 0.0
    %898 = vmatprep.mubr.f32.mxu0 0.0
    %899 = vmatmul.mubr.f32.gmra.mrb[0].mxu0 %v252
    %v900 = vpop.f32.mrb[0].mxu0
    %v901 = vadd.f32 %v827, %v900
    %v902 = vpop.f32.mrb[0].mxu0
    %v903 = vadd.f32 %v831, %v902
    %904 = vdwg.mxu0
    %v905 = vadd.f32 %v821, %v901
    %v906 = vxor.u32 %v905, 2147483648
    %v907 = vmul.f32 %v906, 1.442695
    %v908 = vpow.pop %v907
    %v909 = vadd.f32 %v908, 1.0
    %v910 = vrcp.pop %v909
    %v911 = vmul.f32 1.0, %v910
    %v912 = vmul.f32 %v911, %v903
    %v913 = vadd.f32 %v822, %v912
    %v914 = vtanh.pop %v913
    %v915 = vsub.f32 1.0, %v911
    %917 = vrot.lane.b32.xlu0 %v914, 64
    %v918 = vpop.permute.xlu0 %917
    %v920 = vmul.f32 %v915, %v918
    %v921 = vmul.f32 %v911, 0.0
    %v922 = vadd.f32 %v920, %v921
    %v923 = vrot.slane %v813, 2
    %v924 = vrot.slane %v814, 2
    %v927 = vadd.f32 %v811, %v923
    %v928 = vadd.f32 %v812, %v924
    %930 = vrot.lane.b32.xlu0 %v922, 64
    %v931 = vpop.permute.xlu0 %930
    %v932 = vsel %vm131, %v931, 0
    %934 = vmatprep.subr.mxu0 %v709
    %935 = vmatpush1.msra.mxu0 %v708
    %936 = vmatprep.subr.mxu0 %v711
    %937 = vmatpush1.msra.mxu0 %v710
    %938 = vmatprep.subr.mxu0 %v713
    %939 = vmatpush1.msra.mxu0 %v712
    %940 = vmatprep.subr.mxu0 %v715
    %941 = vmatpush1.msra.mxu0 %v714
    %942 = vmatprep.subr.mxu0 %v717
    %943 = vmatpush1.msra.mxu0 %v716
    %944 = vmatprep.subr.mxu0 %v719
    %945 = vmatpush1.msra.mxu0 %v718
    %946 = vmatprep.subr.mxu0 %v721
    %947 = vmatpush1.msra.mxu0 %v720
    %948 = vmatprep.subr.mxu0 %v723
    %949 = vmatpush1.msra.mxu0 %v722
    %950 = vmatprep.subr.mxu0 0.0
    %951 = vmatpush1.msra.mxu0 0.0
    %952 = vmatprep.subr.mxu0 0.0
    %953 = vmatpush1.msra.mxu0 0.0
    %954 = vmatprep.subr.mxu0 0.0
    %955 = vmatpush1.msra.mxu0 0.0
    %956 = vmatprep.subr.mxu0 0.0
    %957 = vmatpush1.msra.mxu0 0.0
    %958 = vmatprep.subr.mxu0 0.0
    %959 = vmatpush1.msra.mxu0 0.0
    %960 = vmatprep.subr.mxu0 0.0
    %961 = vmatpush1.msra.mxu0 0.0
    %962 = vmatprep.subr.mxu0 0.0
    %963 = vmatpush1.msra.mxu0 0.0
    %964 = vmatprep.subr.mxu0 0.0
    %965 = vmatpush1.msra.mxu0 0.0
    %966 = vmatprep.subr.mxu0 0.0
    %967 = vmatpush1.msra.mxu0 0.0
    %968 = vmatprep.subr.mxu0 0.0
    %969 = vmatpush1.msra.mxu0 0.0
    %970 = vmatprep.subr.mxu0 0.0
    %971 = vmatpush1.msra.mxu0 0.0
    %972 = vmatprep.subr.mxu0 0.0
    %973 = vmatpush1.msra.mxu0 0.0
    %974 = vmatprep.subr.mxu0 0.0
    %975 = vmatpush1.msra.mxu0 0.0
    %976 = vmatprep.subr.mxu0 0.0
    %977 = vmatpush1.msra.mxu0 0.0
    %978 = vmatprep.subr.mxu0 0.0
    %979 = vmatpush1.msra.mxu0 0.0
    %980 = vmatprep.subr.mxu0 0.0
    %981 = vmatpush1.msra.mxu0 0.0
    %982 = vmatprep.subr.mxu0 0.0
    %983 = vmatpush1.msra.mxu0 0.0
    %984 = vmatprep.subr.mxu0 0.0
    %985 = vmatpush1.msra.mxu0 0.0
    %986 = vmatprep.subr.mxu0 0.0
    %987 = vmatpush1.msra.mxu0 0.0
    %988 = vmatprep.subr.mxu0 0.0
    %989 = vmatpush1.msra.mxu0 0.0
    %990 = vmatprep.subr.mxu0 0.0
    %991 = vmatpush1.msra.mxu0 0.0
    %992 = vmatprep.subr.mxu0 0.0
    %993 = vmatpush1.msra.mxu0 0.0
    %994 = vmatprep.subr.mxu0 0.0
    %995 = vmatpush1.msra.mxu0 0.0
    %996 = vmatprep.subr.mxu0 0.0
    %997 = vmatpush1.msra.mxu0 0.0
    %998 = vmatprep.mubr.f32.mxu0 0.0
    %999 = vmatmul.mubr.f32.gmra.mrb[0].mxu0 %v932
    %v1000 = vpop.f32.mrb[0].mxu0
    %v1001 = vadd.f32 %v827, %v1000
    %v1002 = vpop.f32.mrb[0].mxu0
    %v1003 = vadd.f32 %v831, %v1002
    %1004 = vdwg.mxu0
    %v1006 = vrot.slane %v1001, 6
    %v1008 = vadd.f32 %v927, %v1006
    %v1009 = vxor.u32 %v1008, 2147483648
    %v1010 = vmul.f32 %v1009, 1.442695
    %v1011 = vpow.pop %v1010
    %v1012 = vadd.f32 %v1011, 1.0
    %v1013 = vrcp.pop %v1012
    %v1014 = vmul.f32 1.0, %v1013
    %v1016 = vrot.slane %v1003, 6
    %v1018 = vmul.f32 %v1014, %v1016
    %v1019 = vadd.f32 %v928, %v1018
    %v1020 = vtanh.pop %v1019
    %v1021 = vsub.f32 1.0, %v1014
    %1023 = vrot.lane.b32.xlu0 %v1020, 64
    %v1024 = vpop.permute.xlu0 %1023
    %v1026 = vmul.f32 %v1021, %v1024
    %v1027 = vrot.slane %v922, 6
    %v1029 = vmul.f32 %v1014, %v1027
    %v1030 = vadd.f32 %v1026, %v1029
    %v1032 = vrot.slane %v1030, 2
    %1033 = vrot.lane.b32.xlu0 %v1032, 64
    %v1034 = vpop.permute.xlu0 %1033
    %v1035 = vsel %vm131, %v1034, 0
    %1037 = vmatprep.subr.mxu0 %v709
    %1038 = vmatpush1.msra.mxu0 %v708
    %1039 = vmatprep.subr.mxu0 %v711
    %1040 = vmatpush1.msra.mxu0 %v710
    %1041 = vmatprep.subr.mxu0 %v713
    %1042 = vmatpush1.msra.mxu0 %v712
    %1043 = vmatprep.subr.mxu0 %v715
    %1044 = vmatpush1.msra.mxu0 %v714
    %1045 = vmatprep.subr.mxu0 %v717
    %1046 = vmatpush1.msra.mxu0 %v716
    %1047 = vmatprep.subr.mxu0 %v719
    %1048 = vmatpush1.msra.mxu0 %v718
    %1049 = vmatprep.subr.mxu0 %v721
    %1050 = vmatpush1.msra.mxu0 %v720
    %1051 = vmatprep.subr.mxu0 %v723
    %1052 = vmatpush1.msra.mxu0 %v722
    %1053 = vmatprep.subr.mxu0 0.0
    %1054 = vmatpush1.msra.mxu0 0.0
    %1055 = vmatprep.subr.mxu0 0.0
    %1056 = vmatpush1.msra.mxu0 0.0
    %1057 = vmatprep.subr.mxu0 0.0
    %1058 = vmatpush1.msra.mxu0 0.0
    %1059 = vmatprep.subr.mxu0 0.0
    %1060 = vmatpush1.msra.mxu0 0.0
    %1061 = vmatprep.subr.mxu0 0.0
    %1062 = vmatpush1.msra.mxu0 0.0
    %1063 = vmatprep.subr.mxu0 0.0
    %1064 = vmatpush1.msra.mxu0 0.0
    %1065 = vmatprep.subr.mxu0 0.0
    %1066 = vmatpush1.msra.mxu0 0.0
    %1067 = vmatprep.subr.mxu0 0.0
    %1068 = vmatpush1.msra.mxu0 0.0
    %1069 = vmatprep.subr.mxu0 0.0
    %1070 = vmatpush1.msra.mxu0 0.0
    %1071 = vmatprep.subr.mxu0 0.0
    %1072 = vmatpush1.msra.mxu0 0.0
    %1073 = vmatprep.subr.mxu0 0.0
    %1074 = vmatpush1.msra.mxu0 0.0
    %1075 = vmatprep.subr.mxu0 0.0
    %1076 = vmatpush1.msra.mxu0 0.0
    %1077 = vmatprep.subr.mxu0 0.0
    %1078 = vmatpush1.msra.mxu0 0.0
    %1079 = vmatprep.subr.mxu0 0.0
    %1080 = vmatpush1.msra.mxu0 0.0
    %1081 = vmatprep.subr.mxu0 0.0
    %1082 = vmatpush1.msra.mxu0 0.0
    %1083 = vmatprep.subr.mxu0 0.0
    %1084 = vmatpush1.msra.mxu0 0.0
    %1085 = vmatprep.subr.mxu0 0.0
    %1086 = vmatpush1.msra.mxu0 0.0
    %1087 = vmatprep.subr.mxu0 0.0
    %1088 = vmatpush1.msra.mxu0 0.0
    %1089 = vmatprep.subr.mxu0 0.0
    %1090 = vmatpush1.msra.mxu0 0.0
    %1091 = vmatprep.subr.mxu0 0.0
    %1092 = vmatpush1.msra.mxu0 0.0
    %1093 = vmatprep.subr.mxu0 0.0
    %1094 = vmatpush1.msra.mxu0 0.0
    %1095 = vmatprep.subr.mxu0 0.0
    %1096 = vmatpush1.msra.mxu0 0.0
    %1097 = vmatprep.subr.mxu0 0.0
    %1098 = vmatpush1.msra.mxu0 0.0
    %1099 = vmatprep.subr.mxu0 0.0
    %1100 = vmatpush1.msra.mxu0 0.0
    %1101 = vmatprep.mubr.f32.mxu0 0.0
    %1102 = vmatmul.mubr.f32.gmra.mrb[0].mxu0 %v1035
    %v1103 = vpop.f32.mrb[0].mxu0
    %v1104 = vadd.f32 %v827, %v1103
    %v1105 = vpop.f32.mrb[0].mxu0
    %v1106 = vadd.f32 %v831, %v1105
    %1107 = vdwg.mxu0
    %v1109 = vrot.slane %v1104, 4
    %v1111 = vadd.f32 %v821, %v1109
    %v1112 = vxor.u32 %v1111, 2147483648
    %v1113 = vmul.f32 %v1112, 1.442695
    %v1114 = vpow.pop %v1113
    %v1115 = vadd.f32 %v1114, 1.0
    %v1116 = vrcp.pop %v1115
    %v1117 = vmul.f32 1.0, %v1116
    %v1119 = vrot.slane %v1106, 4
    %v1121 = vmul.f32 %v1117, %v1119
    %v1122 = vadd.f32 %v822, %v1121
    %v1123 = vtanh.pop %v1122
    %v1124 = vsub.f32 1.0, %v1117
    %1126 = vrot.lane.b32.xlu0 %v1123, 64
    %v1127 = vpop.permute.xlu0 %1126
    %v1129 = vmul.f32 %v1124, %v1127
    %v1130 = vrot.slane %v1030, 6
    %v1132 = vmul.f32 %v1117, %v1130
    %v1133 = vadd.f32 %v1129, %v1132
    %v1135 = vrot.slane %v1133, 4
    %1136 = vrot.lane.b32.xlu0 %v1135, 64
    %v1137 = vpop.permute.xlu0 %1136
    %v1138 = vsel %vm131, %v1137, 0
    %1140 = vmatprep.subr.mxu0 %v709
    %1141 = vmatpush1.msra.mxu0 %v708
    %1142 = vmatprep.subr.mxu0 %v711
    %1143 = vmatpush1.msra.mxu0 %v710
    %1144 = vmatprep.subr.mxu0 %v713
    %1145 = vmatpush1.msra.mxu0 %v712
    %1146 = vmatprep.subr.mxu0 %v715
    %1147 = vmatpush1.msra.mxu0 %v714
    %1148 = vmatprep.subr.mxu0 %v717
    %1149 = vmatpush1.msra.mxu0 %v716
    %1150 = vmatprep.subr.mxu0 %v719
    %1151 = vmatpush1.msra.mxu0 %v718
    %1152 = vmatprep.subr.mxu0 %v721
    %1153 = vmatpush1.msra.mxu0 %v720
    %1154 = vmatprep.subr.mxu0 %v723
    %1155 = vmatpush1.msra.mxu0 %v722
    %1156 = vmatprep.subr.mxu0 0.0
    %1157 = vmatpush1.msra.mxu0 0.0
    %1158 = vmatprep.subr.mxu0 0.0
    %1159 = vmatpush1.msra.mxu0 0.0
    %1160 = vmatprep.subr.mxu0 0.0
    %1161 = vmatpush1.msra.mxu0 0.0
    %1162 = vmatprep.subr.mxu0 0.0
    %1163 = vmatpush1.msra.mxu0 0.0
    %1164 = vmatprep.subr.mxu0 0.0
    %1165 = vmatpush1.msra.mxu0 0.0
    %1166 = vmatprep.subr.mxu0 0.0
    %1167 = vmatpush1.msra.mxu0 0.0
    %1168 = vmatprep.subr.mxu0 0.0
    %1169 = vmatpush1.msra.mxu0 0.0
    %1170 = vmatprep.subr.mxu0 0.0
    %1171 = vmatpush1.msra.mxu0 0.0
    %1172 = vmatprep.subr.mxu0 0.0
    %1173 = vmatpush1.msra.mxu0 0.0
    %1174 = vmatprep.subr.mxu0 0.0
    %1175 = vmatpush1.msra.mxu0 0.0
    %1176 = vmatprep.subr.mxu0 0.0
    %1177 = vmatpush1.msra.mxu0 0.0
    %1178 = vmatprep.subr.mxu0 0.0
    %1179 = vmatpush1.msra.mxu0 0.0
    %1180 = vmatprep.subr.mxu0 0.0
    %1181 = vmatpush1.msra.mxu0 0.0
    %1182 = vmatprep.subr.mxu0 0.0
    %1183 = vmatpush1.msra.mxu0 0.0
    %1184 = vmatprep.subr.mxu0 0.0
    %1185 = vmatpush1.msra.mxu0 0.0
    %1186 = vmatprep.subr.mxu0 0.0
    %1187 = vmatpush1.msra.mxu0 0.0
    %1188 = vmatprep.subr.mxu0 0.0
    %1189 = vmatpush1.msra.mxu0 0.0
    %1190 = vmatprep.subr.mxu0 0.0
    %1191 = vmatpush1.msra.mxu0 0.0
    %1192 = vmatprep.subr.mxu0 0.0
    %1193 = vmatpush1.msra.mxu0 0.0
    %1194 = vmatprep.subr.mxu0 0.0
    %1195 = vmatpush1.msra.mxu0 0.0
    %1196 = vmatprep.subr.mxu0 0.0
    %1197 = vmatpush1.msra.mxu0 0.0
    %1198 = vmatprep.subr.mxu0 0.0
    %1199 = vmatpush1.msra.mxu0 0.0
    %1200 = vmatprep.subr.mxu0 0.0
    %1201 = vmatpush1.msra.mxu0 0.0
    %1202 = vmatprep.subr.mxu0 0.0
    %1203 = vmatpush1.msra.mxu0 0.0
    %1204 = vmatprep.mubr.f32.mxu0 0.0
    %1205 = vmatmul.mubr.f32.gmra.mrb[0].mxu0 %v1138
    %v1206 = vpop.f32.mrb[0].mxu0
    %v1207 = vadd.f32 %v827, %v1206
    %v1208 = vpop.f32.mrb[0].mxu0
    %v1209 = vadd.f32 %v831, %v1208
    %1210 = vdwg.mxu0
    %v1212 = vrot.slane %v1207, 2
    %v1214 = vadd.f32 %v927, %v1212
    %v1215 = vxor.u32 %v1214, 2147483648
    %v1216 = vmul.f32 %v1215, 1.442695
    %v1217 = vpow.pop %v1216
    %v1218 = vadd.f32 %v1217, 1.0
    %v1219 = vrcp.pop %v1218
    %v1220 = vmul.f32 1.0, %v1219
    %v1222 = vrot.slane %v1209, 2
    %v1224 = vmul.f32 %v1220, %v1222
    %v1225 = vadd.f32 %v928, %v1224
    %v1226 = vtanh.pop %v1225
    %v1227 = vsub.f32 1.0, %v1220
    %1229 = vrot.lane.b32.xlu0 %v1226, 64
    %v1230 = vpop.permute.xlu0 %1229
    %v1232 = vmul.f32 %v1227, %v1230
    %v1233 = vrot.slane %v1133, 6
    %v1235 = vmul.f32 %v1220, %v1233
    %v1236 = vadd.f32 %v1232, %v1235
    %v1237 = vld [vmem:[%s10] sm:$0xff]
    %v1238 = vld [vmem:[%s10 + $0x8] sm:$0xff]
    %v1239 = vld [vmem:[%s10 + $0x10] sm:$0xff]
    %v1240 = vld [vmem:[%s10 + $0x18] sm:$0xff]
    %v1241 = vld [vmem:[%s10 + $0x20] sm:$0xff]
    %v1242 = vld [vmem:[%s10 + $0x28] sm:$0xff]
    %v1243 = vld [vmem:[%s10 + $0x30] sm:$0xff]
    %v1244 = vld [vmem:[%s10 + $0x38] sm:$0xff]
    %v1245 = vld [vmem:[%s11] sm:$0x1]
    %v1247 = vlaneseq
    %v1248 = vshrl.u32 %v1247, 7
    %v1249 = vsub.s32 0, %v1248
    %v1250 = vrot.slane %v1245, %v1249
    %v1253 = vrot.slane %v1236, 6
    %1254 = vrot.lane.b32.xlu0 %v1253, 64
    %v1255 = vpop.permute.xlu0 %1254
    %v1256 = vsel %vm131, %v1255, 0
    %1258 = vmatprep.subr.mxu0 0.0
    %1259 = vmatpush1.msra.mxu0 %v1237
    %1260 = vmatprep.subr.mxu0 0.0
    %1261 = vmatpush1.msra.mxu0 %v1238
    %1262 = vmatprep.subr.mxu0 0.0
    %1263 = vmatpush1.msra.mxu0 %v1239
    %1264 = vmatprep.subr.mxu0 0.0
    %1265 = vmatpush1.msra.mxu0 %v1240
    %1266 = vmatprep.subr.mxu0 0.0
    %1267 = vmatpush1.msra.mxu0 %v1241
    %1268 = vmatprep.subr.mxu0 0.0
    %1269 = vmatpush1.msra.mxu0 %v1242
    %1270 = vmatprep.subr.mxu0 0.0
    %1271 = vmatpush1.msra.mxu0 %v1243
    %1272 = vmatprep.subr.mxu0 0.0
    %1273 = vmatpush1.msra.mxu0 %v1244
    %1274 = vmatprep.subr.mxu0 0.0
    %1275 = vmatpush1.msra.mxu0 0.0
    %1276 = vmatprep.subr.mxu0 0.0
    %1277 = vmatpush1.msra.mxu0 0.0
    %1278 = vmatprep.subr.mxu0 0.0
    %1279 = vmatpush1.msra.mxu0 0.0
    %1280 = vmatprep.subr.mxu0 0.0
    %1281 = vmatpush1.msra.mxu0 0.0
    %1282 = vmatprep.subr.mxu0 0.0
    %1283 = vmatpush1.msra.mxu0 0.0
    %1284 = vmatprep.subr.mxu0 0.0
    %1285 = vmatpush1.msra.mxu0 0.0
    %1286 = vmatprep.subr.mxu0 0.0
    %1287 = vmatpush1.msra.mxu0 0.0
    %1288 = vmatprep.subr.mxu0 0.0
    %1289 = vmatpush1.msra.mxu0 0.0
    %1290 = vmatprep.subr.mxu0 0.0
    %1291 = vmatpush1.msra.mxu0 0.0
    %1292 = vmatprep.subr.mxu0 0.0
    %1293 = vmatpush1.msra.mxu0 0.0
    %1294 = vmatprep.subr.mxu0 0.0
    %1295 = vmatpush1.msra.mxu0 0.0
    %1296 = vmatprep.subr.mxu0 0.0
    %1297 = vmatpush1.msra.mxu0 0.0
    %1298 = vmatprep.subr.mxu0 0.0
    %1299 = vmatpush1.msra.mxu0 0.0
    %1300 = vmatprep.subr.mxu0 0.0
    %1301 = vmatpush1.msra.mxu0 0.0
    %1302 = vmatprep.subr.mxu0 0.0
    %1303 = vmatpush1.msra.mxu0 0.0
    %1304 = vmatprep.subr.mxu0 0.0
    %1305 = vmatpush1.msra.mxu0 0.0
    %1306 = vmatprep.subr.mxu0 0.0
    %1307 = vmatpush1.msra.mxu0 0.0
    %1308 = vmatprep.subr.mxu0 0.0
    %1309 = vmatpush1.msra.mxu0 0.0
    %1310 = vmatprep.subr.mxu0 0.0
    %1311 = vmatpush1.msra.mxu0 0.0
    %1312 = vmatprep.subr.mxu0 0.0
    %1313 = vmatpush1.msra.mxu0 0.0
    %1314 = vmatprep.subr.mxu0 0.0
    %1315 = vmatpush1.msra.mxu0 0.0
    %1316 = vmatprep.subr.mxu0 0.0
    %1317 = vmatpush1.msra.mxu0 0.0
    %1318 = vmatprep.subr.mxu0 0.0
    %1319 = vmatpush1.msra.mxu0 0.0
    %1320 = vmatprep.subr.mxu0 0.0
    %1321 = vmatpush1.msra.mxu0 0.0
    %1322 = vmatprep.mubr.f32.mxu0 0.0
    %1323 = vmatmul.mubr.f32.gmra.mrb[0].mxu0 %v1256
    %v1324 = vpop.f32.mrb[0].mxu0
    %v1325 = vadd.f32 %v1250, %v1324
    %v1326 = vpop.f32.mrb[0].mxu0
    %1327 = vdwg.mxu0
    %vm1328 = vcmask 238592
    %1329 = vst.msk [vmem:[#allocation8] sm:$0x3] %vm1328, %v1325
    // Predicated region
    $region62: #{cnn_rnn_forward.1} parent=1 // pred_check
      _
    $region63: #{cnn_rnn_forward.1} parent=1 // pred_check_branch
      %1331 = sbr.rel (0) target = $region65
    $region64: #{cnn_rnn_forward.1} parent=1 // pred_region
      %s1333 = ssub.s32 32, 32
      %1334 = vsyncadd [#allocation4], %s1333
      %s1336 = sshll.u32 [#allocation8], 4
      %s1337 = int_to_ptr.vmem [resolvable:$true] %s1336
      %1339 = dma.vmem_to_hbm [thread:$0]  %s1337, 32, %s12, [#allocation4]
    $region65: #{cnn_rnn_forward.1} parent=1 // pred_fallthru
      _
    // Predicated region
    $region66: #{cnn_rnn_forward.1} parent=1 // pred_check
      _
    $region67: #{cnn_rnn_forward.1} parent=1 // pred_check_branch
      %1341 = sbr.rel (0) target = $region69
    $region68: #{cnn_rnn_forward.1} parent=1 // pred_region
      %1342 = dma.done [#allocation4], 32
    $region69: #{cnn_rnn_forward.1} parent=1 // pred_fallthru
      _
    %1343 = vsyncpa [#allocation3], 1
    %1344 = vsyncpa [#allocation6], 1
    %1345 = vsyncpa [#allocation4], 1

</llo_original>
